<compile_context>
chip_gen: v5e
topology: v5e:2x2
jax: 0.10.0
libtpu: 0.0.40
codegen_flags: <defaults>
</compile_context>

<pallas_src>
import functools
import math

import numpy as np
import jax
import jax.numpy as jnp
from jax.experimental import pallas as pl
from jax.experimental.pallas import tpu as pltpu


_HAS_PIPELINE_MODE = hasattr(pl, "Buffered")


# ----------------------------------------------------------------------------
# Host-side constant matrices (built once, cached)
# ----------------------------------------------------------------------------
def adaptive_pool_matrix(in_size: int, out_size: int) -> np.ndarray:
    """P[i, h] s.t. pooled[i] = sum_h P[i, h] * x[h] (PyTorch AdaptiveAvgPool bins)."""
    P = np.zeros((out_size, in_size), dtype=np.float32)
    for i in range(out_size):
        start = math.floor(i * in_size / out_size)
        end = math.ceil((i + 1) * in_size / out_size)
        P[i, start:end] = 1.0 / (end - start)
    return P


def bilinear_upsample_matrix(out_size: int, in_size: int) -> np.ndarray:
    """U[o, i] s.t. up[o] = sum_i U[o, i] * y[i] (bilinear, align_corners=True)."""
    U = np.zeros((out_size, in_size), dtype=np.float32)
    for o in range(out_size):
        if in_size == 1 or out_size == 1:
            src = 0.0
        else:
            src = o * (in_size - 1) / (out_size - 1)
        lo = int(math.floor(src))
        hi = min(lo + 1, in_size - 1)
        frac = src - lo
        U[o, lo] += 1.0 - frac
        U[o, hi] += frac
    return U


@functools.lru_cache(maxsize=None)
def _packed_pool_upsample(H: int, W: int, sizes: tuple):
    """Pack every branch's pool / upsample matrices into lane-padded blocks."""
    HW = H * W
    s2_total = sum(s * s for s in sizes)
    s2_pad = max(128, -(-s2_total // 128) * 128)      # round up to lane width
    mt = np.zeros((HW, s2_pad), dtype=np.float32)     # pooled   = x @ mt
    ut = np.zeros((s2_pad, HW), dtype=np.float32)     # branches = y @ ut
    offsets = []
    off = 0
    for s in sizes:
        offsets.append(off)
        Ph = adaptive_pool_matrix(H, s)               # (s, H)
        Pw = adaptive_pool_matrix(W, s)               # (s, W)
        M = np.einsum("ih,jw->ijhw", Ph, Pw).reshape(s * s, HW)
        mt[:, off:off + s * s] = M.T
        Uh = bilinear_upsample_matrix(H, s)           # (H, s)
        Uw = bilinear_upsample_matrix(W, s)           # (W, s)
        U = np.einsum("hi,wj->hwij", Uh, Uw).reshape(HW, s * s)
        ut[off:off + s * s, :] = U.T
        off += s * s
    return mt, ut, tuple(offsets), s2_total, s2_pad


# ----------------------------------------------------------------------------
# Per-generation VMEM sizing
# ----------------------------------------------------------------------------
def _tpu_vmem_capacity_bytes() -> int:
    cap = 128 * 1024 * 1024
    try:
        info = pltpu.get_tpu_info()
        cap = int(getattr(info, "vmem_capacity_bytes", cap))
    except Exception:
        pass
    return cap


def _vmem_limit_bytes(cap: int) -> int:
    # Leave headroom for compiler-internal scratch; never request the full part.
    return min(cap * 7 // 8, 112 * 1024 * 1024)   # ~56 MiB on v7x, 112 MiB on v5e/v6e


def _pick_hw_tile(HW: int, cap: int) -> int:
    """Largest lane-dense (multiple-of-128) HW tile that divides HW."""
    max_tile = 1024 if cap >= (96 << 20) else 512      # deeper tiles on 128-MiB parts
    if HW % 128 == 0:
        best, t = 128, 128
        while t <= min(max_tile, HW):
            if HW % t == 0:
                best = t
            t += 128
        return best
    # TODO(synk): ragged last tile (HW not a multiple of 128) -> single full-HW block.
    return HW


# ----------------------------------------------------------------------------
# Pallas kernel
#   grid = (batch, phase, hw_tile)   phase 0: pool + passthrough, phase 1: upsample
# ----------------------------------------------------------------------------
def psp_fused_kernel(x_ref, mt_ref, w_ref, b_ref, mask_ref, ut_ref, out_ref,
                     pooled_acc, y_acc, *, compute_dtype):
    phase = pl.program_id(1)
    t = pl.program_id(2)
    last_t = pl.num_programs(2) - 1

    # ---- phase 0: stream x, write passthrough rows, accumulate adaptive pool ----
    @pl.when(phase == 0)
    def _pool_and_passthrough():
        x = x_ref[0, :, :]                                 # (C, hw_t) f32
        out_ref[0, :, :] = x                               # exact identity passthrough

        @pl.when(t == 0)
        def _():
            pooled_acc[...] = jnp.zeros_like(pooled_acc)

        # partial adaptive-average-pool sums for ALL branches (one MXU matmul)
        pooled_acc[...] += jnp.dot(x.astype(compute_dtype), mt_ref[...],
                                   preferred_element_type=jnp.float32)

    # ---- end of HW reduction: stacked 1x1 conv (BN folded) + bias + ReLU + mask ----
    @pl.when((phase == 0) & (t == last_t))
    def _conv_bn_relu():
        y = jnp.dot(w_ref[...], pooled_acc[...].astype(compute_dtype),
                    preferred_element_type=jnp.float32)    # (KCout, s2_pad)
        y = jnp.maximum(y + b_ref[...], 0.0) * mask_ref[...]
        y_acc[...] = y.astype(y_acc.dtype)

    # ---- phase 1: bilinear upsample of all branches for this output HW tile ----
    @pl.when(phase == 1)
    def _upsample():
        out_ref[0, :, :] = jnp.dot(y_acc[...], ut_ref[...],
                                   preferred_element_type=jnp.float32
                                   ).astype(out_ref.dtype)


# ----------------------------------------------------------------------------
# Public wrapper (NCHW in / NCHW out, like the PyTorch module)
# ----------------------------------------------------------------------------
def psp_module_forward(x, branch_params, sizes=(1, 2, 3, 6),
                       compute_dtype=jnp.bfloat16, hw_tile=None):
    """x: (B, C, H, W) float32. Returns (B, K*(C//K) + C, H, W) float32."""
    B, C, H, W = x.shape
    K = len(sizes)
    Cout = C // K
    KCout = K * Cout
    HW = H * W
    if KCout != C:
        # TODO(synk): general C % K != 0 needs unequal output row blocks.
        raise NotImplementedError("psp_module_forward requires C %% len(sizes) == 0")

    mt_np, ut_np, offsets, s2_total, s2_pad = _packed_pool_upsample(H, W, tuple(sizes))

    vmem_cap = _tpu_vmem_capacity_bytes()
    hw_t = _pick_hw_tile(HW, vmem_cap) if hw_tile is None else int(hw_tile)
    assert HW % hw_t == 0 and (hw_t % 128 == 0 or hw_t == HW), (HW, hw_t)
    n_t = HW // hw_t

    # Fold eval-mode BatchNorm into the stacked 1x1 conv weights / bias column.
    w_np = np.zeros((KCout, C), dtype=np.float32)
    b_np = np.zeros((KCout, 1), dtype=np.float32)
    for k, p in enumerate(branch_params):
        rows = slice(k * Cout, (k + 1) * Cout)
        if p["use_bn"]:
            scale = p["gamma"] / np.sqrt(p["var"] + 1e-5)
            w_np[rows] = p["weight"] * scale[:, None]
            b_np[rows, 0] = p["beta"] - p["mean"] * scale
        else:
            w_np[rows] = p["weight"]
            b_np[rows, 0] = p["bias"]

    # Hoisted block-diagonal mask: row-block k keeps only its own s_k^2 columns.
    mask_np = np.zeros((KCout, s2_pad), dtype=np.float32)
    for k, s in enumerate(sizes):
        mask_np[k * Cout:(k + 1) * Cout, offsets[k]:offsets[k] + s * s] = 1.0

    x_flat = x.reshape(B, C, HW).astype(jnp.float32)   # stays f32: exact passthrough
    mt = jnp.asarray(mt_np, dtype=compute_dtype)
    ut = jnp.asarray(ut_np, dtype=compute_dtype)
    w = jnp.asarray(w_np, dtype=compute_dtype)
    b = jnp.asarray(b_np, dtype=jnp.float32)
    mask = jnp.asarray(mask_np, dtype=jnp.float32)

    itemsize = jnp.dtype(compute_dtype).itemsize
    flops = 2 * B * (C * HW * s2_pad + KCout * C * s2_pad + KCout * s2_pad * HW)
    bytes_accessed = (B * (C * HW * 4 + (KCout + C) * HW * 4)
                      + (HW * s2_pad + s2_pad * HW + KCout * C) * itemsize
                      + KCout * (1 + s2_pad) * 4)

    kernel = functools.partial(psp_fused_kernel, compute_dtype=compute_dtype)

    def _launch(use_buffered):
        def const_spec(shape):
            # Constant-index operands: fetched once; single VMEM buffer if supported.
            if use_buffered:
                return pl.BlockSpec(shape, lambda bi, p, t: (0, 0),
                                    pipeline_mode=pl.Buffered(1))
            return pl.BlockSpec(shape, lambda bi, p, t: (0, 0))

        return pl.pallas_call(
            kernel,
            out_shape=jax.ShapeDtypeStruct((B, KCout + C, HW), jnp.float32),
            grid=(B, 2, n_t),
            in_specs=[
                # x: hw-tiled during phase 0; parked on the last tile in phase 1
                pl.BlockSpec((1, C, hw_t),
                             lambda bi, p, t: (bi, 0, t * (1 - p) + (n_t - 1) * p)),
                # packed pool matrix: same hw tiling as x
                pl.BlockSpec((hw_t, s2_pad),
                             lambda bi, p, t: (t * (1 - p) + (n_t - 1) * p, 0)),
                const_spec((KCout, C)),        # stacked 1x1-conv weights (BN folded)
                const_spec((KCout, 1)),        # bias column (broadcast in-kernel)
                const_spec((KCout, s2_pad)),   # block-diagonal branch mask
                # packed upsample matrix: hw-tiled during phase 1 only
                pl.BlockSpec((s2_pad, hw_t), lambda bi, p, t: (0, t * p)),
            ],
            # one lane-dense (C, hw_t) output tile per step:
            #   phase 0 -> passthrough rows (row-block 1), phase 1 -> branch rows (0)
            out_specs=pl.BlockSpec((1, C, hw_t), lambda bi, p, t: (bi, 1 - p, t)),
            scratch_shapes=[
                pltpu.VMEM((C, s2_pad), jnp.float32),        # pooled accumulator
                pltpu.VMEM((KCout, s2_pad), compute_dtype),  # conv+relu+mask result
            ],
            compiler_params=pltpu.CompilerParams(
                dimension_semantics=("parallel", "arbitrary", "arbitrary"),
                vmem_limit_bytes=_vmem_limit_bytes(vmem_cap),
            ),
            cost_estimate=pl.CostEstimate(
                flops=flops, transcendentals=0, bytes_accessed=bytes_accessed),
        )(x_flat, mt, w, b, mask, ut)

    try:
        out = _launch(use_buffered=_HAS_PIPELINE_MODE)
    except Exception:
        if not _HAS_PIPELINE_MODE:
            raise
        # Fallback for jax builds where pipeline_mode=pl.Buffered(1) is rejected.
        out = _launch(use_buffered=False)

    return out.reshape(B, KCout + C, H, W)


# ----------------------------------------------------------------------------
# Pure numpy reference (direct adaptive pool + 1x1 conv + bilinear interpolation)
# ----------------------------------------------------------------------------
def psp_module_reference(x, branch_params, sizes=(1, 2, 3, 6)):
    x = np.asarray(x, dtype=np.float64)
    B, C, H, W = x.shape
    K = len(sizes)
    Cout = C // K
    outs = []
    for k, s in enumerate(sizes):
        pooled = np.zeros((B, C, s, s))
        for i in range(s):
            hs, he = math.floor(i * H / s), math.ceil((i + 1) * H / s)
            for j in range(s):
                ws, we = math.floor(j * W / s), math.ceil((j + 1) * W / s)
                pooled[:, :, i, j] = x[:, :, hs:he, ws:we].mean(axis=(2, 3))
        p = branch_params[k]
        if p["use_bn"]:
            scale = p["gamma"] / np.sqrt(p["var"] + 1e-5)
            weff = p["weight"] * scale[:, None]
            beff = p["beta"] - p["mean"] * scale
        else:
            weff = p["weight"]
            beff = p["bias"]
        y = np.einsum("oc,bcij->boij", weff, pooled) + beff[None, :, None, None]
        y = np.maximum(y, 0.0)
        up = np.zeros((B, Cout, H, W))
        for oh in range(H):
            sh = 0.0 if s == 1 else oh * (s - 1) / (H - 1)
            h0 = int(math.floor(sh)); h1 = min(h0 + 1, s - 1); fh = sh - h0
            for ow in range(W):
                sw = 0.0 if s == 1 else ow * (s - 1) / (W - 1)
                w0 = int(math.floor(sw)); w1 = min(w0 + 1, s - 1); fw = sw - w0
                up[:, :, oh, ow] = ((1 - fh) * (1 - fw) * y[:, :, h0, w0]
                                    + (1 - fh) * fw * y[:, :, h0, w1]
                                    + fh * (1 - fw) * y[:, :, h1, w0]
                                    + fh * fw * y[:, :, h1, w1])
        outs.append(up)
    outs.append(x)
    return np.concatenate(outs, axis=1)


# ----------------------------------------------------------------------------
# Main
# ----------------------------------------------------------------------------
if __name__ == "__main__":
    B, C, H, W = 2, 8, 16, 16
    sizes = (1, 2, 3, 6)
    K = len(sizes)
    Cout = C // K

    key = jax.random.PRNGKey(0)
    key, kx = jax.random.split(key)
    x = jax.random.normal(kx, (B, C, H, W), dtype=jnp.float32)

    # Deterministic synthetic parameters (eval-mode BatchNorm stats).
    branch_params = []
    for k, s in enumerate(sizes):
        key, kw, kg, kb, km, kv, kbias = jax.random.split(key, 7)
        weight = np.asarray(jax.random.normal(kw, (Cout, C)) * 0.5, dtype=np.float32)
        if s == 1:
            # pool_size == 1  ->  use_bathcnorm forced False  ->  conv has a bias
            bias = np.asarray(jax.random.normal(kbias, (Cout,)) * 0.1, dtype=np.float32)
            branch_params.append({"use_bn": False, "weight": weight, "bias": bias})
        else:
            gamma = np.asarray(1.0 + 0.1 * jax.random.normal(kg, (Cout,)), dtype=np.float32)
            beta = np.asarray(0.1 * jax.random.normal(kb, (Cout,)), dtype=np.float32)
            mean = np.asarray(0.1 * jax.random.normal(km, (Cout,)), dtype=np.float32)
            var = np.asarray(0.5 + np.abs(np.asarray(jax.random.normal(kv, (Cout,)))),
                             dtype=np.float32)
            branch_params.append({"use_bn": True, "weight": weight, "gamma": gamma,
                                  "beta": beta, "mean": mean, "var": var})

    ref = psp_module_reference(np.asarray(x), branch_params, sizes)
    out_shape = (B, C + K * Cout, H, W)

    # f32 compute path with hw_tile=128 -> exercises the 2-tile HW reduction.
    out_f32 = jax.block_until_ready(
        psp_module_forward(x, branch_params, sizes,
                           compute_dtype=jnp.float32, hw_tile=128))
    assert out_f32.shape == out_shape, out_f32.shape
    np.testing.assert_allclose(np.asarray(out_f32), ref, rtol=1e-4, atol=1e-4)

    # f32 compute path with the auto-selected (single 256-wide) tile.
    out_f32b = jax.block_until_ready(
        psp_module_forward(x, branch_params, sizes, compute_dtype=jnp.float32))
    assert out_f32b.shape == out_shape, out_f32b.shape
    np.testing.assert_allclose(np.asarray(out_f32b), ref, rtol=1e-4, atol=1e-4)

    # Default bf16 MXU-operand path (looser tolerance for bf16 rounding).
    out_bf16 = jax.block_until_ready(
        psp_module_forward(x, branch_params, sizes,
                           compute_dtype=jnp.bfloat16, hw_tile=128))
    assert out_bf16.shape == out_shape, out_bf16.shape
    np.testing.assert_allclose(np.asarray(out_bf16), ref, rtol=5e-2, atol=5e-2)

    print("KERNEL_OK")
</pallas_src>

<mosaic_0001>
module attributes {stable_mosaic.version = 11 : i64} {
  func.func @psp_fused_kernel(%arg0: i32, %arg1: i32, %arg2: i32, %arg3: memref<1x8x128xf32, #tpu.memory_space<vmem>>, %arg4: memref<128x128xf32, #tpu.memory_space<vmem>>, %arg5: memref<8x8xf32, #tpu.memory_space<vmem>>, %arg6: memref<8x1xf32, #tpu.memory_space<vmem>>, %arg7: memref<8x128xf32, #tpu.memory_space<vmem>>, %arg8: memref<128x128xf32, #tpu.memory_space<vmem>>, %arg9: memref<1x8x128xf32, #tpu.memory_space<vmem>>, %arg10: memref<8x128xf32, #tpu.memory_space<vmem>>, %arg11: memref<8x128xf32, #tpu.memory_space<vmem>>) attributes {dimension_semantics = [#tpu.dimension_semantics<parallel>, #tpu.dimension_semantics<arbitrary>, #tpu.dimension_semantics<arbitrary>], iteration_bounds = array<i64: 2, 2, 2>, scalar_prefetch = 0 : i64, scratch_operands = 2 : i64, tpu.core_type = #tpu.core_type<tc>, window_params = [{transform_indices = @transform_0, window_bounds = array<i64: 1, 8, 128>}, {transform_indices = @transform_1, window_bounds = array<i64: 128, 128>}, {pipeline_mode = #tpu.pipeline_mode<synchronous>, transform_indices = @transform_2, window_bounds = array<i64: 8, 8>}, {pipeline_mode = #tpu.pipeline_mode<synchronous>, transform_indices = @transform_3, window_bounds = array<i64: 8, 1>}, {pipeline_mode = #tpu.pipeline_mode<synchronous>, transform_indices = @transform_4, window_bounds = array<i64: 8, 128>}, {transform_indices = @transform_5, window_bounds = array<i64: 128, 128>}, {transform_indices = @transform_6, window_bounds = array<i64: 1, 8, 128>}]} {
    %c0_i32 = arith.constant 0 : i32
    %0 = arith.cmpi eq, %arg1, %c0_i32 : i32
    %1 = arith.extui %0 : i1 to i32
    %c0_i32_0 = arith.constant 0 : i32
    %2 = arith.cmpi ne, %1, %c0_i32_0 : i32
    scf.if %2 {
      %c0 = arith.constant 0 : index
      %c0_5 = arith.constant 0 : index
      %c0_6 = arith.constant 0 : index
      %11 = vector.load %arg3[%c0, %c0_5, %c0_6] : memref<1x8x128xf32, #tpu.memory_space<vmem>>, vector<1x8x128xf32>
      %12 = vector.shape_cast %11 : vector<1x8x128xf32> to vector<8x128xf32>
      %c0_7 = arith.constant 0 : index
      %c0_8 = arith.constant 0 : index
      %c0_9 = arith.constant 0 : index
      %13 = vector.load %arg9[%c0_7, %c0_8, %c0_9] : memref<1x8x128xf32, #tpu.memory_space<vmem>>, vector<1x8x128xf32>
      %14 = vector.shape_cast %13 : vector<1x8x128xf32> to vector<8x128xf32>
      %15 = vector.shape_cast %12 : vector<8x128xf32> to vector<1x8x128xf32>
      tpu.vector_store %arg9[%c0_7, %c0_8, %c0_9], %15 {strides = array<i32>} : memref<1x8x128xf32, #tpu.memory_space<vmem>>, vector<1x8x128xf32>,
      %c0_i32_10 = arith.constant 0 : i32
      %16 = arith.cmpi eq, %arg2, %c0_i32_10 : i32
      %17 = arith.extui %16 : i1 to i32
      %c0_i32_11 = arith.constant 0 : i32
      %18 = arith.cmpi ne, %17, %c0_i32_11 : i32
      scf.if %18 {
        %cst_18 = arith.constant 0.000000e+00 : f32
        %24 = vector.broadcast %cst_18 : f32 to vector<8x128xf32>
        %c0_19 = arith.constant 0 : index
        %c0_20 = arith.constant 0 : index
        %25 = vector.load %arg10[%c0_19, %c0_20] : memref<8x128xf32, #tpu.memory_space<vmem>>, vector<8x128xf32>
        tpu.vector_store %arg10[%c0_19, %c0_20], %24 {strides = array<i32>} : memref<8x128xf32, #tpu.memory_space<vmem>>, vector<8x128xf32>,
      } else {
      }
      %c0_12 = arith.constant 0 : index
      %c0_13 = arith.constant 0 : index
      %19 = vector.load %arg10[%c0_12, %c0_13] : memref<8x128xf32, #tpu.memory_space<vmem>>, vector<8x128xf32>
      %c0_14 = arith.constant 0 : index
      %c0_15 = arith.constant 0 : index
      %20 = vector.load %arg4[%c0_14, %c0_15] : memref<128x128xf32, #tpu.memory_space<vmem>>, vector<128x128xf32>
      %cst = arith.constant dense<0.000000e+00> : vector<8x128xf32>
      %21 = tpu.matmul %12, %20, %cst {dimension_numbers = #tpu.dot_dimension_numbers<[1], [0], [0], [1], [0, 0, 1, 1], [], []>} : vector<8x128xf32>, vector<128x128xf32>, vector<8x128xf32> -> vector<8x128xf32>
      %22 = arith.addf %19, %21 : vector<8x128xf32>
      %c0_16 = arith.constant 0 : index
      %c0_17 = arith.constant 0 : index
      %23 = vector.load %arg10[%c0_16, %c0_17] : memref<8x128xf32, #tpu.memory_space<vmem>>, vector<8x128xf32>
      tpu.vector_store %arg10[%c0_16, %c0_17], %22 {strides = array<i32>} : memref<8x128xf32, #tpu.memory_space<vmem>>, vector<8x128xf32>,
    } else {
    }
    %c0_i32_1 = arith.constant 0 : i32
    %3 = arith.cmpi eq, %arg1, %c0_i32_1 : i32
    %c1_i32 = arith.constant 1 : i32
    %4 = arith.cmpi eq, %arg2, %c1_i32 : i32
    %5 = arith.andi %3, %4 : i1
    %6 = arith.extui %5 : i1 to i32
    %c0_i32_2 = arith.constant 0 : i32
    %7 = arith.cmpi ne, %6, %c0_i32_2 : i32
    scf.if %7 {
      %c0 = arith.constant 0 : index
      %c0_5 = arith.constant 0 : index
      %11 = vector.load %arg5[%c0, %c0_5] : memref<8x8xf32, #tpu.memory_space<vmem>>, vector<8x8xf32>
      %c0_6 = arith.constant 0 : index
      %c0_7 = arith.constant 0 : index
      %12 = vector.load %arg10[%c0_6, %c0_7] : memref<8x128xf32, #tpu.memory_space<vmem>>, vector<8x128xf32>
      %cst = arith.constant dense<0.000000e+00> : vector<8x128xf32>
      %13 = tpu.matmul %11, %12, %cst {dimension_numbers = #tpu.dot_dimension_numbers<[1], [0], [0], [1], [0, 0, 1, 1], [], []>} : vector<8x8xf32>, vector<8x128xf32>, vector<8x128xf32> -> vector<8x128xf32>
      %c0_8 = arith.constant 0 : index
      %c0_9 = arith.constant 0 : index
      %14 = vector.load %arg6[%c0_8, %c0_9] : memref<8x1xf32, #tpu.memory_space<vmem>>, vector<8x1xf32>
      %15 = vector.broadcast %14 : vector<8x1xf32> to vector<8x128xf32>
      %16 = arith.addf %13, %15 : vector<8x128xf32>
      %cst_10 = arith.constant 0.000000e+00 : f32
      %17 = vector.broadcast %cst_10 : f32 to vector<8x128xf32>
      %18 = arith.maximumf %16, %17 : vector<8x128xf32>
      %c0_11 = arith.constant 0 : index
      %c0_12 = arith.constant 0 : index
      %19 = vector.load %arg7[%c0_11, %c0_12] : memref<8x128xf32, #tpu.memory_space<vmem>>, vector<8x128xf32>
      %20 = arith.mulf %18, %19 : vector<8x128xf32>
      %c0_13 = arith.constant 0 : index
      %c0_14 = arith.constant 0 : index
      %21 = vector.load %arg11[%c0_13, %c0_14] : memref<8x128xf32, #tpu.memory_space<vmem>>, vector<8x128xf32>
      tpu.vector_store %arg11[%c0_13, %c0_14], %20 {strides = array<i32>} : memref<8x128xf32, #tpu.memory_space<vmem>>, vector<8x128xf32>,
    } else {
    }
    %c1_i32_3 = arith.constant 1 : i32
    %8 = arith.cmpi eq, %arg1, %c1_i32_3 : i32
    %9 = arith.extui %8 : i1 to i32
    %c0_i32_4 = arith.constant 0 : i32
    %10 = arith.cmpi ne, %9, %c0_i32_4 : i32
    scf.if %10 {
      %c0 = arith.constant 0 : index
      %c0_5 = arith.constant 0 : index
      %11 = vector.load %arg11[%c0, %c0_5] : memref<8x128xf32, #tpu.memory_space<vmem>>, vector<8x128xf32>
      %c0_6 = arith.constant 0 : index
      %c0_7 = arith.constant 0 : index
      %12 = vector.load %arg8[%c0_6, %c0_7] : memref<128x128xf32, #tpu.memory_space<vmem>>, vector<128x128xf32>
      %cst = arith.constant dense<0.000000e+00> : vector<8x128xf32>
      %13 = tpu.matmul %11, %12, %cst {dimension_numbers = #tpu.dot_dimension_numbers<[1], [0], [0], [1], [0, 0, 1, 1], [], []>} : vector<8x128xf32>, vector<128x128xf32>, vector<8x128xf32> -> vector<8x128xf32>
      %c0_8 = arith.constant 0 : index
      %c0_9 = arith.constant 0 : index
      %c0_10 = arith.constant 0 : index
      %14 = vector.load %arg9[%c0_8, %c0_9, %c0_10] : memref<1x8x128xf32, #tpu.memory_space<vmem>>, vector<1x8x128xf32>
      %15 = vector.shape_cast %14 : vector<1x8x128xf32> to vector<8x128xf32>
      %16 = vector.shape_cast %13 : vector<8x128xf32> to vector<1x8x128xf32>
      tpu.vector_store %arg9[%c0_8, %c0_9, %c0_10], %16 {strides = array<i32>} : memref<1x8x128xf32, #tpu.memory_space<vmem>>, vector<1x8x128xf32>,
    } else {
    }
    return
  }
  func.func @transform_0(%arg0: i32, %arg1: i32, %arg2: i32) -> (i32, i32, i32) {
    %c1_i32 = arith.constant 1 : i32
    %0 = arith.subi %c1_i32, %arg1 : i32
    %1 = arith.muli %arg2, %0 : i32
    %c1_i32_0 = arith.constant 1 : i32
    %2 = arith.muli %c1_i32_0, %arg1 : i32
    %3 = arith.addi %1, %2 : i32
    %c0_i32 = arith.constant 0 : i32
    %c0_i32_1 = arith.constant 0 : i32
    return %arg0, %c0_i32, %3 : i32, i32, i32
  }
  func.func @transform_1(%arg0: i32, %arg1: i32, %arg2: i32) -> (i32, i32) {
    %c1_i32 = arith.constant 1 : i32
    %0 = arith.subi %c1_i32, %arg1 : i32
    %1 = arith.muli %arg2, %0 : i32
    %c1_i32_0 = arith.constant 1 : i32
    %2 = arith.muli %c1_i32_0, %arg1 : i32
    %3 = arith.addi %1, %2 : i32
    %c0_i32 = arith.constant 0 : i32
    %c0_i32_1 = arith.constant 0 : i32
    return %3, %c0_i32 : i32, i32
  }
  func.func @transform_2(%arg0: i32, %arg1: i32, %arg2: i32) -> (i32, i32) {
    %c0_i32 = arith.constant 0 : i32
    %c0_i32_0 = arith.constant 0 : i32
    %c0_i32_1 = arith.constant 0 : i32
    return %c0_i32, %c0_i32_0 : i32, i32
  }
  func.func @transform_3(%arg0: i32, %arg1: i32, %arg2: i32) -> (i32, i32) {
    %c0_i32 = arith.constant 0 : i32
    %c0_i32_0 = arith.constant 0 : i32
    %c0_i32_1 = arith.constant 0 : i32
    return %c0_i32, %c0_i32_0 : i32, i32
  }
  func.func @transform_4(%arg0: i32, %arg1: i32, %arg2: i32) -> (i32, i32) {
    %c0_i32 = arith.constant 0 : i32
    %c0_i32_0 = arith.constant 0 : i32
    %c0_i32_1 = arith.constant 0 : i32
    return %c0_i32, %c0_i32_0 : i32, i32
  }
  func.func @transform_5(%arg0: i32, %arg1: i32, %arg2: i32) -> (i32, i32) {
    %0 = arith.muli %arg2, %arg1 : i32
    %c0_i32 = arith.constant 0 : i32
    %c0_i32_0 = arith.constant 0 : i32
    return %c0_i32, %0 : i32, i32
  }
  func.func @transform_6(%arg0: i32, %arg1: i32, %arg2: i32) -> (i32, i32, i32) {
    %c1_i32 = arith.constant 1 : i32
    %0 = arith.subi %c1_i32, %arg1 : i32
    %c0_i32 = arith.constant 0 : i32
    return %arg0, %0, %arg2 : i32, i32, i32
  }
}

module attributes {stable_mosaic.version = 11 : i64} {
  func.func @psp_fused_kernel(%arg0: i32, %arg1: i32, %arg2: i32, %arg3: memref<1x8x128xf32, #tpu.memory_space<vmem>>, %arg4: memref<128x128xf32, #tpu.memory_space<vmem>>, %arg5: memref<8x8xf32, #tpu.memory_space<vmem>>, %arg6: memref<8x1xf32, #tpu.memory_space<vmem>>, %arg7: memref<8x128xf32, #tpu.memory_space<vmem>>, %arg8: memref<128x128xf32, #tpu.memory_space<vmem>>, %arg9: memref<1x8x128xf32, #tpu.memory_space<vmem>>, %arg10: memref<8x128xf32, #tpu.memory_space<vmem>>, %arg11: memref<8x128xf32, #tpu.memory_space<vmem>>) attributes {dimension_semantics = [#tpu.dimension_semantics<parallel>, #tpu.dimension_semantics<arbitrary>, #tpu.dimension_semantics<arbitrary>], iteration_bounds = array<i64: 2, 2, 2>, scalar_prefetch = 0 : i64, scratch_operands = 2 : i64, tpu.core_type = #tpu.core_type<tc>, window_params = [{transform_indices = @transform_0, window_bounds = array<i64: 1, 8, 128>}, {transform_indices = @transform_1, window_bounds = array<i64: 128, 128>}, {pipeline_mode = #tpu.pipeline_mode<synchronous>, transform_indices = @transform_2, window_bounds = array<i64: 8, 8>}, {pipeline_mode = #tpu.pipeline_mode<synchronous>, transform_indices = @transform_3, window_bounds = array<i64: 8, 1>}, {pipeline_mode = #tpu.pipeline_mode<synchronous>, transform_indices = @transform_4, window_bounds = array<i64: 8, 128>}, {transform_indices = @transform_5, window_bounds = array<i64: 128, 128>}, {transform_indices = @transform_6, window_bounds = array<i64: 1, 8, 128>}]} {
    %c0_i32 = arith.constant 0 : i32
    %0 = arith.cmpi eq, %arg1, %c0_i32 : i32
    %1 = arith.extui %0 : i1 to i32
    %c0_i32_0 = arith.constant 0 : i32
    %2 = arith.cmpi ne, %1, %c0_i32_0 : i32
    scf.if %2 {
      %c0 = arith.constant 0 : index
      %c0_5 = arith.constant 0 : index
      %c0_6 = arith.constant 0 : index
      %11 = vector.load %arg3[%c0, %c0_5, %c0_6] : memref<1x8x128xf32, #tpu.memory_space<vmem>>, vector<1x8x128xf32>
      %12 = vector.shape_cast %11 : vector<1x8x128xf32> to vector<8x128xf32>
      %c0_7 = arith.constant 0 : index
      %c0_8 = arith.constant 0 : index
      %c0_9 = arith.constant 0 : index
      %13 = vector.load %arg9[%c0_7, %c0_8, %c0_9] : memref<1x8x128xf32, #tpu.memory_space<vmem>>, vector<1x8x128xf32>
      %14 = vector.shape_cast %13 : vector<1x8x128xf32> to vector<8x128xf32>
      %15 = vector.shape_cast %12 : vector<8x128xf32> to vector<1x8x128xf32>
      tpu.vector_store %arg9[%c0_7, %c0_8, %c0_9], %15 {strides = array<i32>} : memref<1x8x128xf32, #tpu.memory_space<vmem>>, vector<1x8x128xf32>,
      %c0_i32_10 = arith.constant 0 : i32
      %16 = arith.cmpi eq, %arg2, %c0_i32_10 : i32
      %17 = arith.extui %16 : i1 to i32
      %c0_i32_11 = arith.constant 0 : i32
      %18 = arith.cmpi ne, %17, %c0_i32_11 : i32
      scf.if %18 {
        %cst_18 = arith.constant 0.000000e+00 : f32
        %24 = vector.broadcast %cst_18 : f32 to vector<8x128xf32>
        %c0_19 = arith.constant 0 : index
        %c0_20 = arith.constant 0 : index
        %25 = vector.load %arg10[%c0_19, %c0_20] : memref<8x128xf32, #tpu.memory_space<vmem>>, vector<8x128xf32>
        tpu.vector_store %arg10[%c0_19, %c0_20], %24 {strides = array<i32>} : memref<8x128xf32, #tpu.memory_space<vmem>>, vector<8x128xf32>,
      } else {
      }
      %c0_12 = arith.constant 0 : index
      %c0_13 = arith.constant 0 : index
      %19 = vector.load %arg10[%c0_12, %c0_13] : memref<8x128xf32, #tpu.memory_space<vmem>>, vector<8x128xf32>
      %c0_14 = arith.constant 0 : index
      %c0_15 = arith.constant 0 : index
      %20 = vector.load %arg4[%c0_14, %c0_15] : memref<128x128xf32, #tpu.memory_space<vmem>>, vector<128x128xf32>
      %cst = arith.constant dense<0.000000e+00> : vector<8x128xf32>
      %21 = tpu.matmul %12, %20, %cst {dimension_numbers = #tpu.dot_dimension_numbers<[1], [0], [0], [1], [0, 0, 1, 1], [], []>} : vector<8x128xf32>, vector<128x128xf32>, vector<8x128xf32> -> vector<8x128xf32>
      %22 = arith.addf %19, %21 : vector<8x128xf32>
      %c0_16 = arith.constant 0 : index
      %c0_17 = arith.constant 0 : index
      %23 = vector.load %arg10[%c0_16, %c0_17] : memref<8x128xf32, #tpu.memory_space<vmem>>, vector<8x128xf32>
      tpu.vector_store %arg10[%c0_16, %c0_17], %22 {strides = array<i32>} : memref<8x128xf32, #tpu.memory_space<vmem>>, vector<8x128xf32>,
    } else {
    }
    %c0_i32_1 = arith.constant 0 : i32
    %3 = arith.cmpi eq, %arg1, %c0_i32_1 : i32
    %c1_i32 = arith.constant 1 : i32
    %4 = arith.cmpi eq, %arg2, %c1_i32 : i32
    %5 = arith.andi %3, %4 : i1
    %6 = arith.extui %5 : i1 to i32
    %c0_i32_2 = arith.constant 0 : i32
    %7 = arith.cmpi ne, %6, %c0_i32_2 : i32
    scf.if %7 {
      %c0 = arith.constant 0 : index
      %c0_5 = arith.constant 0 : index
      %11 = vector.load %arg5[%c0, %c0_5] : memref<8x8xf32, #tpu.memory_space<vmem>>, vector<8x8xf32>
      %c0_6 = arith.constant 0 : index
      %c0_7 = arith.constant 0 : index
      %12 = vector.load %arg10[%c0_6, %c0_7] : memref<8x128xf32, #tpu.memory_space<vmem>>, vector<8x128xf32>
      %cst = arith.constant dense<0.000000e+00> : vector<8x128xf32>
      %13 = tpu.matmul %11, %12, %cst {dimension_numbers = #tpu.dot_dimension_numbers<[1], [0], [0], [1], [0, 0, 1, 1], [], []>} : vector<8x8xf32>, vector<8x128xf32>, vector<8x128xf32> -> vector<8x128xf32>
      %c0_8 = arith.constant 0 : index
      %c0_9 = arith.constant 0 : index
      %14 = vector.load %arg6[%c0_8, %c0_9] : memref<8x1xf32, #tpu.memory_space<vmem>>, vector<8x1xf32>
      %15 = vector.broadcast %14 : vector<8x1xf32> to vector<8x128xf32>
      %16 = arith.addf %13, %15 : vector<8x128xf32>
      %cst_10 = arith.constant 0.000000e+00 : f32
      %17 = vector.broadcast %cst_10 : f32 to vector<8x128xf32>
      %18 = arith.maximumf %16, %17 : vector<8x128xf32>
      %c0_11 = arith.constant 0 : index
      %c0_12 = arith.constant 0 : index
      %19 = vector.load %arg7[%c0_11, %c0_12] : memref<8x128xf32, #tpu.memory_space<vmem>>, vector<8x128xf32>
      %20 = arith.mulf %18, %19 : vector<8x128xf32>
      %c0_13 = arith.constant 0 : index
      %c0_14 = arith.constant 0 : index
      %21 = vector.load %arg11[%c0_13, %c0_14] : memref<8x128xf32, #tpu.memory_space<vmem>>, vector<8x128xf32>
      tpu.vector_store %arg11[%c0_13, %c0_14], %20 {strides = array<i32>} : memref<8x128xf32, #tpu.memory_space<vmem>>, vector<8x128xf32>,
    } else {
    }
    %c1_i32_3 = arith.constant 1 : i32
    %8 = arith.cmpi eq, %arg1, %c1_i32_3 : i32
    %9 = arith.extui %8 : i1 to i32
    %c0_i32_4 = arith.constant 0 : i32
    %10 = arith.cmpi ne, %9, %c0_i32_4 : i32
    scf.if %10 {
      %c0 = arith.constant 0 : index
      %c0_5 = arith.constant 0 : index
      %11 = vector.load %arg11[%c0, %c0_5] : memref<8x128xf32, #tpu.memory_space<vmem>>, vector<8x128xf32>
      %c0_6 = arith.constant 0 : index
      %c0_7 = arith.constant 0 : index
      %12 = vector.load %arg8[%c0_6, %c0_7] : memref<128x128xf32, #tpu.memory_space<vmem>>, vector<128x128xf32>
      %cst = arith.constant dense<0.000000e+00> : vector<8x128xf32>
      %13 = tpu.matmul %11, %12, %cst {dimension_numbers = #tpu.dot_dimension_numbers<[1], [0], [0], [1], [0, 0, 1, 1], [], []>} : vector<8x128xf32>, vector<128x128xf32>, vector<8x128xf32> -> vector<8x128xf32>
      %c0_8 = arith.constant 0 : index
      %c0_9 = arith.constant 0 : index
      %c0_10 = arith.constant 0 : index
      %14 = vector.load %arg9[%c0_8, %c0_9, %c0_10] : memref<1x8x128xf32, #tpu.memory_space<vmem>>, vector<1x8x128xf32>
      %15 = vector.shape_cast %14 : vector<1x8x128xf32> to vector<8x128xf32>
      %16 = vector.shape_cast %13 : vector<8x128xf32> to vector<1x8x128xf32>
      tpu.vector_store %arg9[%c0_8, %c0_9, %c0_10], %16 {strides = array<i32>} : memref<1x8x128xf32, #tpu.memory_space<vmem>>, vector<1x8x128xf32>,
    } else {
    }
    return
  }
  func.func @transform_0(%arg0: i32, %arg1: i32, %arg2: i32) -> (i32, i32, i32) {
    %c1_i32 = arith.constant 1 : i32
    %0 = arith.subi %c1_i32, %arg1 : i32
    %1 = arith.muli %arg2, %0 : i32
    %c1_i32_0 = arith.constant 1 : i32
    %2 = arith.muli %c1_i32_0, %arg1 : i32
    %3 = arith.addi %1, %2 : i32
    %c0_i32 = arith.constant 0 : i32
    %c0_i32_1 = arith.constant 0 : i32
    return %arg0, %c0_i32, %3 : i32, i32, i32
  }
  func.func @transform_1(%arg0: i32, %arg1: i32, %arg2: i32) -> (i32, i32) {
    %c1_i32 = arith.constant 1 : i32
    %0 = arith.subi %c1_i32, %arg1 : i32
    %1 = arith.muli %arg2, %0 : i32
    %c1_i32_0 = arith.constant 1 : i32
    %2 = arith.muli %c1_i32_0, %arg1 : i32
    %3 = arith.addi %1, %2 : i32
    %c0_i32 = arith.constant 0 : i32
    %c0_i32_1 = arith.constant 0 : i32
    return %3, %c0_i32 : i32, i32
  }
  func.func @transform_2(%arg0: i32, %arg1: i32, %arg2: i32) -> (i32, i32) {
    %c0_i32 = arith.constant 0 : i32
    %c0_i32_0 = arith.constant 0 : i32
    %c0_i32_1 = arith.constant 0 : i32
    return %c0_i32, %c0_i32_0 : i32, i32
  }
  func.func @transform_3(%arg0: i32, %arg1: i32, %arg2: i32) -> (i32, i32) {
    %c0_i32 = arith.constant 0 : i32
    %c0_i32_0 = arith.constant 0 : i32
    %c0_i32_1 = arith.constant 0 : i32
    return %c0_i32, %c0_i32_0 : i32, i32
  }
  func.func @transform_4(%arg0: i32, %arg1: i32, %arg2: i32) -> (i32, i32) {
    %c0_i32 = arith.constant 0 : i32
    %c0_i32_0 = arith.constant 0 : i32
    %c0_i32_1 = arith.constant 0 : i32
    return %c0_i32, %c0_i32_0 : i32, i32
  }
  func.func @transform_5(%arg0: i32, %arg1: i32, %arg2: i32) -> (i32, i32) {
    %0 = arith.muli %arg2, %arg1 : i32
    %c0_i32 = arith.constant 0 : i32
    %c0_i32_0 = arith.constant 0 : i32
    return %c0_i32, %0 : i32, i32
  }
  func.func @transform_6(%arg0: i32, %arg1: i32, %arg2: i32) -> (i32, i32, i32) {
    %c1_i32 = arith.constant 1 : i32
    %0 = arith.subi %c1_i32, %arg1 : i32
    %c0_i32 = arith.constant 0 : i32
    return %arg0, %0, %arg2 : i32, i32, i32
  }
}

</mosaic_0001>

<llo_original>
// kernel: tpu_custom_call.1
$region0: #{tpu_custom_call.1}
  #allocation0 [shape = 'u32[]', space=smem, size = 0x4, offset = 0x4, fixed_abs, tag = 'smem constant byte address 0x4 - core index']
  #allocation1 [shape = 'u32[72,128]{1,0:T(1,128)}', space=vmem, size = 0x9000, scoped, tag = 'internal scratch']
  #allocation2 [shape = 'f32[8,128]{1,0:T(8,128)}', space=vmem, size = 0x1000, scoped, tag = 'scratch operand']
  #allocation3 [shape = 'f32[8,128]{1,0:T(8,128)}', space=vmem, size = 0x1000, scoped, tag = 'scratch operand']
  %s0 = inlined_call_operand.hbm [shape: f32[2,8,256], index: 0, kind: input, shape index: {}]
  %s1 = inlined_call_operand.hbm [shape: f32[256,128], index: 1, kind: input, shape index: {}]
  %s2 = inlined_call_operand.vmem [shape: f32[8,8], index: 2, kind: input, shape index: {}]
  %s3 = inlined_call_operand.vmem [shape: f32[8,1], index: 3, kind: input, shape index: {}]
  %s4 = inlined_call_operand.hbm [shape: f32[8,128], index: 4, kind: input, shape index: {}]
  %s5 = inlined_call_operand.hbm [shape: f32[128,256], index: 5, kind: input, shape index: {}]
  %s6 = inlined_call_operand.hbm [shape: f32[2,16,256], index: 6, kind: output, shape index: {}]
  %s7 = sld [smem:[#allocation0]]
  $region89: #{tpu_custom_call.1} parent=0
    _
  %s9 = ssub.s32 1, %s7
  %s10 = scalar_select 0, %s9, %s7
  $region1: #{tpu_custom_call.1} parent=0
    #allocation4 [shape = 'u8[8192]{0}', space=vmem, size = 0x2000, scoped, tag = 'input window, operand 0']
    #allocation5 [shape = 's32[2]{0}', space=sflag, size = 0x8, scoped, tag = 'scoped memory for tpu_custom_call.1']
    #allocation6 [shape = 's32[2]{0}', space=sflag, size = 0x8, scoped, tag = 'scoped memory for tpu_custom_call.1']
    #allocation7 [shape = 'u8[131072]{0}', space=vmem, size = 0x20000, scoped, tag = 'input window, operand 1']
    #allocation8 [shape = 's32[2]{0}', space=sflag, size = 0x8, scoped, tag = 'scoped memory for tpu_custom_call.1']
    #allocation9 [shape = 'u8[4096]{0}', space=vmem, size = 0x1000, scoped, tag = 'input window, operand 4, single buffered']
    #allocation10 [shape = 'u8[131072]{0}', space=vmem, size = 0x20000, scoped, tag = 'input window, operand 5']
    #allocation11 [shape = 's32[2]{0}', space=sflag, size = 0x8, scoped, tag = 'scoped memory for tpu_custom_call.1']
    #allocation12 [shape = 'u8[8192]{0}', space=vmem, size = 0x2000, scoped, tag = 'output window, operand 0']
    %11 = vsyncpa [#allocation5], 0
    %s12 = scalar_lea.sflag [#allocation5], 1
    %13 = vsyncpa %s12, 0
    %14 = vsyncpa [#allocation8], 0
    %s15 = scalar_lea.sflag [#allocation8], 1
    %16 = vsyncpa %s15, 0
    %17 = vsyncpa [#allocation11], 0
    %s18 = scalar_lea.sflag [#allocation11], 1
    %19 = vsyncpa %s18, 0
    %20 = vsyncpa [#allocation6], 0
    %s21 = scalar_lea.sflag [#allocation6], 1
    %22 = vsyncpa %s21, 0
    loop: start=0, step=1, limit=10
    $region2: #{tpu_custom_call.1} parent=1 // loop_pre_header
      _
    $region3: #{tpu_custom_call.1} parent=1 // loop_header
      %s24 = sphi 0, %s28
      %p25 = scmp.ge.s32.totalorder %s24, 10
      %s31 = sphi 0, %s50
      %s32 = sphi 0, %s46
      %s33 = sphi 0, %s42
      %s34 = sphi 0, %s31
      %s35 = sphi 0, %s32
      %s36 = sphi 0, %s33
      %s37 = sphi 0, %s34
      %s38 = sphi 0, %s35
      %s39 = sphi 0, %s36
      %s61 = sphi 0, %s63
      %s64 = sphi 0, %s61
      %s65 = sphi 0, %s64
      %s81 = sphi 0, %s65
      %s93 = sphi 0, %s95
      %s96 = sphi 0, %s93
      %s97 = sphi 0, %s96
      %s113 = sphi 0, %s97
      %s117 = sphi 0, %s117
      %s119 = sphi 0, %s117
      %s120 = sphi 0, %s119
      %s134 = sphi 0, %s120
      %s138 = sphi 0, %s138
      %s140 = sphi 0, %s138
      %s141 = sphi 0, %s140
      %s155 = sphi 0, %s141
      %s159 = sphi 0, %s159
      %s161 = sphi 0, %s159
      %s162 = sphi 0, %s161
      %s176 = sphi 0, %s162
      %s184 = sphi 0, %s186
      %s187 = sphi 0, %s184
      %s188 = sphi 0, %s187
      %s204 = sphi 0, %s188
      %s216 = sphi 0, %s218
      %s219 = sphi 0, %s216
      %s220 = sphi 0, %s219
      %s236 = sphi 0, %s220
    $region4: #{tpu_custom_call.1} parent=1 // loop_header_branch
      %27 = sbr.rel (%p25) target = $region8
    $region5: #{tpu_custom_call.1} parent=1 // loop_body
      %s29 = ssub.s32 %s24, 1
      %s30 = ssub.s32 %s24, 2
      %s40 = sadd.s32 1, %s33
      %p41 = scmp.ge.s32.totalorder %s40, 2
      %s42 = scalar_select %p41, 0, %s40
      %s43 = sadd.s32 1, %s32
      %s44 = scalar_select %p41, %s43, %s32
      %p45 = scmp.ge.s32.totalorder %s44, 2
      %s46 = scalar_select %p45, 0, %s44
      %s47 = sadd.s32 1, %s31
      %s48 = scalar_select %p45, %s47, %s31
      %p49 = scmp.ge.s32.totalorder %s48, 2
      %s50 = scalar_select %p49, 0, %s48
      %s51 = ssub.s32 1, %s32
      %s52 = smul.u32 %s33, %s51
      %s53 = sadd.s32 %s52, %s32
      %s54 = ssub.s32 1, %s46
      %s55 = smul.u32 %s42, %s54
      %s56 = sadd.s32 %s55, %s46
      %s57 = ssub.s32 %s31, %s50
      %s58 = ssub.s32 %s53, %s56
      %s59 = sor.u32 %s57, %s58
      %p60 = scmp.eq.s32.totalorder %s59, 0
      %s62 = sadd.s32 %s61, 1
      %s63 = scalar_select %p60, %s61, %s62
      %p66 = pneg %p60
      %p67 = scmp.eq.s32.totalorder %s24, 7
      %p68 = por %p66, %p67
      %p69 = scmp.ne.s32.totalorder %s61, %s64
      %p70 = scmp.eq.s32.totalorder %s24, 0
      %p71 = por %p69, %p70
      %p72 = scmp.ne.s32.totalorder %s61, %s64
      %p73 = scmp.eq.s32.totalorder %s29, 7
      %p74 = por %p72, %p73
      %p75 = scmp.ne.s32.totalorder %s64, %s65
      %p76 = scmp.eq.s32.totalorder %s29, 0
      %p77 = por %p75, %p76
      %p78 = scmp.ne.s32.totalorder %s64, %s65
      %p79 = scmp.eq.s32.totalorder %s30, 7
      %p80 = por %p78, %p79
      %p82 = scmp.ne.s32.totalorder %s65, %s81
      %p83 = scmp.eq.s32.totalorder %s30, 0
      %p84 = por %p82, %p83
      %s85 = ssub.s32 1, %s32
      %s86 = smul.u32 %s33, %s85
      %s87 = sadd.s32 %s86, %s32
      %s88 = ssub.s32 1, %s46
      %s89 = smul.u32 %s42, %s88
      %s90 = sadd.s32 %s89, %s46
      %s91 = ssub.s32 %s87, %s90
      %p92 = scmp.eq.s32.totalorder %s91, 0
      %s94 = sadd.s32 %s93, 1
      %s95 = scalar_select %p92, %s93, %s94
      %p98 = pneg %p92
      %p99 = scmp.eq.s32.totalorder %s24, 7
      %p100 = por %p98, %p99
      %p101 = scmp.ne.s32.totalorder %s93, %s96
      %p102 = scmp.eq.s32.totalorder %s24, 0
      %p103 = por %p101, %p102
      %p104 = scmp.ne.s32.totalorder %s93, %s96
      %p105 = scmp.eq.s32.totalorder %s29, 7
      %p106 = por %p104, %p105
      %p107 = scmp.ne.s32.totalorder %s96, %s97
      %p108 = scmp.eq.s32.totalorder %s29, 0
      %p109 = por %p107, %p108
      %p110 = scmp.ne.s32.totalorder %s96, %s97
      %p111 = scmp.eq.s32.totalorder %s30, 7
      %p112 = por %p110, %p111
      %p114 = scmp.ne.s32.totalorder %s97, %s113
      %p115 = scmp.eq.s32.totalorder %s30, 0
      %p116 = por %p114, %p115
      %s118 = sadd.s32 %s117, 1
      %p121 = scmp.eq.s32.totalorder %s24, 7
      %p122 = scmp.ne.s32.totalorder %s117, %s119
      %p123 = scmp.eq.s32.totalorder %s24, 0
      %p124 = por %p122, %p123
      %p125 = scmp.ne.s32.totalorder %s117, %s119
      %p126 = scmp.eq.s32.totalorder %s29, 7
      %p127 = por %p125, %p126
      %p128 = scmp.ne.s32.totalorder %s119, %s120
      %p129 = scmp.eq.s32.totalorder %s29, 0
      %p130 = por %p128, %p129
      %p131 = scmp.ne.s32.totalorder %s119, %s120
      %p132 = scmp.eq.s32.totalorder %s30, 7
      %p133 = por %p131, %p132
      %p135 = scmp.ne.s32.totalorder %s120, %s134
      %p136 = scmp.eq.s32.totalorder %s30, 0
      %p137 = por %p135, %p136
      %s139 = sadd.s32 %s138, 1
      %p142 = scmp.eq.s32.totalorder %s24, 7
      %p143 = scmp.ne.s32.totalorder %s138, %s140
      %p144 = scmp.eq.s32.totalorder %s24, 0
      %p145 = por %p143, %p144
      %p146 = scmp.ne.s32.totalorder %s138, %s140
      %p147 = scmp.eq.s32.totalorder %s29, 7
      %p148 = por %p146, %p147
      %p149 = scmp.ne.s32.totalorder %s140, %s141
      %p150 = scmp.eq.s32.totalorder %s29, 0
      %p151 = por %p149, %p150
      %p152 = scmp.ne.s32.totalorder %s140, %s141
      %p153 = scmp.eq.s32.totalorder %s30, 7
      %p154 = por %p152, %p153
      %p156 = scmp.ne.s32.totalorder %s141, %s155
      %p157 = scmp.eq.s32.totalorder %s30, 0
      %p158 = por %p156, %p157
      %s160 = sadd.s32 %s159, 1
      %p163 = scmp.eq.s32.totalorder %s24, 7
      %p164 = scmp.ne.s32.totalorder %s159, %s161
      %p165 = scmp.eq.s32.totalorder %s24, 0
      %p166 = por %p164, %p165
      %p167 = scmp.ne.s32.totalorder %s159, %s161
      %p168 = scmp.eq.s32.totalorder %s29, 7
      %p169 = por %p167, %p168
      %p170 = scmp.ne.s32.totalorder %s161, %s162
      %p171 = scmp.eq.s32.totalorder %s29, 0
      %p172 = por %p170, %p171
      %p173 = scmp.ne.s32.totalorder %s161, %s162
      %p174 = scmp.eq.s32.totalorder %s30, 7
      %p175 = por %p173, %p174
      %p177 = scmp.ne.s32.totalorder %s162, %s176
      %p178 = scmp.eq.s32.totalorder %s30, 0
      %p179 = por %p177, %p178
      %s180 = smul.u32 %s33, %s32
      %s181 = smul.u32 %s42, %s46
      %s182 = ssub.s32 %s180, %s181
      %p183 = scmp.eq.s32.totalorder %s182, 0
      %s185 = sadd.s32 %s184, 1
      %s186 = scalar_select %p183, %s184, %s185
      %p189 = pneg %p183
      %p190 = scmp.eq.s32.totalorder %s24, 7
      %p191 = por %p189, %p190
      %p192 = scmp.ne.s32.totalorder %s184, %s187
      %p193 = scmp.eq.s32.totalorder %s24, 0
      %p194 = por %p192, %p193
      %p195 = scmp.ne.s32.totalorder %s184, %s187
      %p196 = scmp.eq.s32.totalorder %s29, 7
      %p197 = por %p195, %p196
      %p198 = scmp.ne.s32.totalorder %s187, %s188
      %p199 = scmp.eq.s32.totalorder %s29, 0
      %p200 = por %p198, %p199
      %p201 = scmp.ne.s32.totalorder %s187, %s188
      %p202 = scmp.eq.s32.totalorder %s30, 7
      %p203 = por %p201, %p202
      %p205 = scmp.ne.s32.totalorder %s188, %s204
      %p206 = scmp.eq.s32.totalorder %s30, 0
      %p207 = por %p205, %p206
      %s208 = ssub.s32 1, %s32
      %s209 = ssub.s32 1, %s46
      %s210 = ssub.s32 %s31, %s50
      %s211 = ssub.s32 %s208, %s209
      %s212 = sor.u32 %s210, %s211
      %s213 = ssub.s32 %s33, %s42
      %s214 = sor.u32 %s212, %s213
      %p215 = scmp.eq.s32.totalorder %s214, 0
      %s217 = sadd.s32 %s216, 1
      %s218 = scalar_select %p215, %s216, %s217
      %p221 = pneg %p215
      %p222 = scmp.eq.s32.totalorder %s24, 7
      %p223 = por %p221, %p222
      %p224 = scmp.ne.s32.totalorder %s216, %s219
      %p225 = scmp.eq.s32.totalorder %s24, 0
      %p226 = por %p224, %p225
      %p227 = scmp.ne.s32.totalorder %s216, %s219
      %p228 = scmp.eq.s32.totalorder %s29, 7
      %p229 = por %p227, %p228
      %p230 = scmp.ne.s32.totalorder %s219, %s220
      %p231 = scmp.eq.s32.totalorder %s29, 0
      %p232 = por %p230, %p231
      %p233 = scmp.ne.s32.totalorder %s219, %s220
      %p234 = scmp.eq.s32.totalorder %s30, 7
      %p235 = por %p233, %p234
      %p237 = scmp.ne.s32.totalorder %s220, %s236
      %p238 = scmp.eq.s32.totalorder %s30, 0
      %p239 = por %p237, %p238
      %p240 = scmp.le.s32.totalorder 1, %s24
      %p241 = scmp.lt.s32.totalorder %s24, 9
      %p242 = pnand %p240, %p241
      %p243 = pneg %p242
      // Predicated region
      $region9: #{tpu_custom_call.1} parent=5 // pred_check
        _
      $region10: #{tpu_custom_call.1} parent=5 // pred_check_branch
        %245 = sbr.rel (%p242) target = $region12
      $region11: #{tpu_custom_call.1} parent=5 // pred_region
        %s246 = ssub.s32 %s24, 1
        // Predicated region
        $region13: #{tpu_custom_call.1} parent=11 // pred_check
          %p247 = pneg %p130
        $region14: #{tpu_custom_call.1} parent=11 // pred_check_branch
          %249 = sbr.rel (%p247) target = $region16
        $region15: #{tpu_custom_call.1} parent=11 // pred_region
          _
        $region16: #{tpu_custom_call.1} parent=11 // pred_fallthru
          _
        // Predicated region
        $region17: #{tpu_custom_call.1} parent=11 // pred_check
          %p250 = pneg %p151
        $region18: #{tpu_custom_call.1} parent=11 // pred_check_branch
          %252 = sbr.rel (%p250) target = $region20
        $region19: #{tpu_custom_call.1} parent=11 // pred_region
          _
        $region20: #{tpu_custom_call.1} parent=11 // pred_fallthru
          _
        // Predicated region
        $region21: #{tpu_custom_call.1} parent=11 // pred_check
          %p253 = pneg %p172
        $region22: #{tpu_custom_call.1} parent=11 // pred_check_branch
          %255 = sbr.rel (%p253) target = $region24
        $region23: #{tpu_custom_call.1} parent=11 // pred_region
          %257 = vsyncadd [#allocation8], 0
          %s259 = sshll.u32 %s4, 4
          %s260 = int_to_ptr.hbm [resolvable:$true] %s259
          %s261 = sshll.u32 [#allocation9], 4
          %s262 = int_to_ptr.vmem [resolvable:$true] %s261
          %264 = dma.hbm_to_vmem [thread:$0]  %s260, 128, %s262, [#allocation8]
        $region24: #{tpu_custom_call.1} parent=11 // pred_fallthru
          _
      $region12: #{tpu_custom_call.1} parent=5 // pred_fallthru
        _
      %p265 = scmp.lt.s32.totalorder %s24, 8
      // Predicated region
      $region25: #{tpu_custom_call.1} parent=5 // pred_check
        %p266 = pneg %p265
      $region26: #{tpu_custom_call.1} parent=5 // pred_check_branch
        %268 = sbr.rel (%p266) target = $region28
      $region27: #{tpu_custom_call.1} parent=5 // pred_region
        // Predicated region
        $region29: #{tpu_custom_call.1} parent=27 // pred_check
          %p269 = pneg %p71
        $region30: #{tpu_custom_call.1} parent=27 // pred_check_branch
          %271 = sbr.rel (%p269) target = $region32
        $region31: #{tpu_custom_call.1} parent=27 // pred_region
          %s272 = sand.u32 %s61, 1
          %s273 = scalar_lea.sflag [#allocation5], %s272
          %s274 = sand.u32 %s61, 1
          %s275 = smul.addr %s274, 8
          %s276 = scalar_lea.vmem [#allocation4], %s275
          %s277 = ssub.s32 1, %s32
          %s278 = smul.u32 %s33, %s277
          %s279 = sadd.s32 %s278, %s32
          %281 = vsyncadd %s273, 0
          %s282 = smul.addr %s31, 2
          %s283 = sadd.s32 %s279, %s282
          %s284 = smul.addr %s283, 8
          %s285 = scalar_lea.hbm %s0, %s284
          %s287 = sshll.u32 %s285, 4
          %s288 = int_to_ptr.hbm [resolvable:$true] %s287
          %s289 = sshll.u32 %s276, 4
          %s290 = int_to_ptr.vmem [resolvable:$true] %s289
          %292 = dma.hbm_to_vmem [thread:$0]  %s288, 128, %s290, %s273
        $region32: #{tpu_custom_call.1} parent=27 // pred_fallthru
          _
        // Predicated region
        $region33: #{tpu_custom_call.1} parent=27 // pred_check
          %p293 = pneg %p103
        $region34: #{tpu_custom_call.1} parent=27 // pred_check_branch
          %295 = sbr.rel (%p293) target = $region36
        $region35: #{tpu_custom_call.1} parent=27 // pred_region
          %s296 = sand.u32 %s24, 1
          %s297 = scalar_lea.sflag [#allocation8], %s296
          %s298 = sand.u32 %s93, 1
          %s299 = smul.addr %s298, 128
          %s300 = scalar_lea.vmem [#allocation7], %s299
          %s301 = ssub.s32 1, %s32
          %s302 = smul.u32 %s33, %s301
          %s303 = sadd.s32 %s302, %s32
          %s304 = smul.u32 16, %s303
          %306 = vsyncadd %s297, 0
          %s307 = smul.addr %s304, 8
          %s308 = scalar_lea.hbm %s1, %s307
          %s309 = sshll.u32 %s308, 4
          %s310 = int_to_ptr.hbm [resolvable:$true] %s309
          %s311 = sshll.u32 %s300, 4
          %s312 = int_to_ptr.vmem [resolvable:$true] %s311
          %317 = dma.hbm_to_vmem [thread:$0]  %s310, 2048, %s312, %s297, 128, 128, 8
        $region36: #{tpu_custom_call.1} parent=27 // pred_fallthru
          _
        // Predicated region
        $region37: #{tpu_custom_call.1} parent=27 // pred_check
          %p318 = pneg %p194
        $region38: #{tpu_custom_call.1} parent=27 // pred_check_branch
          %320 = sbr.rel (%p318) target = $region40
        $region39: #{tpu_custom_call.1} parent=27 // pred_region
          %s321 = sand.u32 %s184, 1
          %s322 = scalar_lea.sflag [#allocation11], %s321
          %s323 = sand.u32 %s184, 1
          %s324 = smul.addr %s323, 128
          %s325 = scalar_lea.vmem [#allocation10], %s324
          %s326 = smul.u32 %s33, %s32
          %328 = vsyncadd %s322, 0
          %s329 = smul.addr %s326, 8
          %s330 = scalar_lea.hbm %s5, %s329
          %s331 = sshll.u32 %s330, 4
          %s332 = int_to_ptr.hbm [resolvable:$true] %s331
          %s333 = sshll.u32 %s325, 4
          %s334 = int_to_ptr.vmem [resolvable:$true] %s333
          %339 = dma.hbm_to_vmem [thread:$0]  %s332, 2048, %s334, %s322, 256, 128, 8
        $region40: #{tpu_custom_call.1} parent=27 // pred_fallthru
          _
      $region28: #{tpu_custom_call.1} parent=5 // pred_fallthru
        _
      %p340 = scmp.le.s32.totalorder 1, %s24
      %p341 = scmp.lt.s32.totalorder %s24, 9
      %p342 = pnand %p340, %p341
      %p343 = pneg %p342
      // Predicated region
      $region41: #{tpu_custom_call.1} parent=5 // pred_check
        _
      $region42: #{tpu_custom_call.1} parent=5 // pred_check_branch
        %345 = sbr.rel (%p342) target = $region44
      $region43: #{tpu_custom_call.1} parent=5 // pred_region
        %s346 = ssub.s32 %s24, 1
        %s347 = sand.u32 %s64, 1
        %s348 = scalar_lea.sflag [#allocation5], %s347
        %s349 = sand.u32 %s64, 1
        %s350 = smul.addr %s349, 8
        %s351 = scalar_lea.vmem [#allocation4], %s350
        // Predicated region
        $region45: #{tpu_custom_call.1} parent=43 // pred_check
          %p352 = pneg %p77
        $region46: #{tpu_custom_call.1} parent=43 // pred_check_branch
          %354 = sbr.rel (%p352) target = $region48
        $region47: #{tpu_custom_call.1} parent=43 // pred_region
          %356 = dma.done %s348, 128
        $region48: #{tpu_custom_call.1} parent=43 // pred_fallthru
          _
        %s357 = sand.u32 %s29, 1
        %s358 = scalar_lea.sflag [#allocation8], %s357
        %s359 = sand.u32 %s96, 1
        %s360 = smul.addr %s359, 128
        %s361 = scalar_lea.vmem [#allocation7], %s360
        // Predicated region
        $region49: #{tpu_custom_call.1} parent=43 // pred_check
          %p362 = pneg %p109
        $region50: #{tpu_custom_call.1} parent=43 // pred_check_branch
          %364 = sbr.rel (%p362) target = $region52
        $region51: #{tpu_custom_call.1} parent=43 // pred_region
          %366 = dma.done %s358, 2048
        $region52: #{tpu_custom_call.1} parent=43 // pred_fallthru
          _
        // Predicated region
        $region53: #{tpu_custom_call.1} parent=43 // pred_check
          %p367 = pneg %p172
        $region54: #{tpu_custom_call.1} parent=43 // pred_check_branch
          %369 = sbr.rel (%p367) target = $region56
        $region55: #{tpu_custom_call.1} parent=43 // pred_region
          %371 = dma.done [#allocation8], 128
        $region56: #{tpu_custom_call.1} parent=43 // pred_fallthru
          _
        %s372 = sand.u32 %s187, 1
        %s373 = scalar_lea.sflag [#allocation11], %s372
        %s374 = sand.u32 %s187, 1
        %s375 = smul.addr %s374, 128
        %s376 = scalar_lea.vmem [#allocation10], %s375
        // Predicated region
        $region57: #{tpu_custom_call.1} parent=43 // pred_check
          %p377 = pneg %p200
        $region58: #{tpu_custom_call.1} parent=43 // pred_check_branch
          %379 = sbr.rel (%p377) target = $region60
        $region59: #{tpu_custom_call.1} parent=43 // pred_region
          %381 = dma.done %s373, 2048
        $region60: #{tpu_custom_call.1} parent=43 // pred_fallthru
          _
        %s382 = sand.u32 %s64, 1
        %s383 = scalar_lea.sflag [#allocation5], %s382
        %s384 = sand.u32 %s64, 1
        %s385 = smul.addr %s384, 8
        %s386 = scalar_lea.vmem [#allocation4], %s385
        %p387 = pneg %p77
        %p388 = pneg %p74
        %s389 = sand.u32 %s29, 1
        %s390 = scalar_lea.sflag [#allocation8], %s389
        %s391 = sand.u32 %s96, 1
        %s392 = smul.addr %s391, 128
        %s393 = scalar_lea.vmem [#allocation7], %s392
        %p394 = pneg %p109
        %p395 = pneg %p106
        %p396 = pneg %p130
        %p397 = pneg %p127
        %p398 = pneg %p151
        %p399 = pneg %p148
        %p400 = pneg %p172
        %p401 = pneg %p169
        %s402 = sand.u32 %s187, 1
        %s403 = scalar_lea.sflag [#allocation11], %s402
        %s404 = sand.u32 %s187, 1
        %s405 = smul.addr %s404, 128
        %s406 = scalar_lea.vmem [#allocation10], %s405
        %p407 = pneg %p200
        %p408 = pneg %p197
        %p409 = pneg %p232
        %p410 = pneg %p229
        %s411 = sand.u32 %s219, 1
        %s412 = scalar_lea.sflag [#allocation6], %s411
        %s413 = sand.u32 %s219, 1
        %s414 = smul.addr %s413, 8
        %s415 = scalar_lea.vmem [#allocation12], %s414
        %s416 = ssub.s32 1, %s35
        %s417 = smul.u32 %s36, %s416
        %s418 = sadd.s32 %s417, %s35
        %s419 = ssub.s32 1, %s35
        %s420 = smul.u32 %s36, %s419
        %s421 = sadd.s32 %s420, %s35
        %s422 = smul.u32 16, %s421
        %s423 = smul.u32 %s36, %s35
        %s424 = ssub.s32 1, %s35
        %p425 = scmp.eq.s32.totalorder %s35, 0
        // Predicated region
        $region61: #{tpu_custom_call.1} parent=43 // pred_check
          %p426 = pneg %p425
        $region62: #{tpu_custom_call.1} parent=43 // pred_check_branch
          %428 = sbr.rel (%p426) target = $region64
        $region63: #{tpu_custom_call.1} parent=43 // pred_region
          %v429 = vld [vmem:[%s351] sm:$0xff]
          %430 = vst [vmem:[%s415] sm:$0xff] %v429
          %p431 = scmp.eq.s32.totalorder %s36, 0
          // Predicated region
          $region65: #{tpu_custom_call.1} parent=63 // pred_check
            %p432 = pneg %p431
          $region66: #{tpu_custom_call.1} parent=63 // pred_check_branch
            %434 = sbr.rel (%p432) target = $region68
          $region67: #{tpu_custom_call.1} parent=63 // pred_region
            %435 = vst [vmem:[#allocation2] sm:$0xff] 0.0
          $region68: #{tpu_custom_call.1} parent=63 // pred_fallthru
            _
          %v436 = vld [vmem:[#allocation2] sm:$0xff]
          %v437 = vld [vmem:[%s361] sm:$0xff]
          %v438 = vld [vmem:[%s361 + $0x8] sm:$0xff]
          %v439 = vld [vmem:[%s361 + $0x10] sm:$0xff]
          %v440 = vld [vmem:[%s361 + $0x18] sm:$0xff]
          %v441 = vld [vmem:[%s361 + $0x20] sm:$0xff]
          %v442 = vld [vmem:[%s361 + $0x28] sm:$0xff]
          %v443 = vld [vmem:[%s361 + $0x30] sm:$0xff]
          %v444 = vld [vmem:[%s361 + $0x38] sm:$0xff]
          %v445 = vld [vmem:[%s361 + $0x40] sm:$0xff]
          %v446 = vld [vmem:[%s361 + $0x48] sm:$0xff]
          %v447 = vld [vmem:[%s361 + $0x50] sm:$0xff]
          %v448 = vld [vmem:[%s361 + $0x58] sm:$0xff]
          %v449 = vld [vmem:[%s361 + $0x60] sm:$0xff]
          %v450 = vld [vmem:[%s361 + $0x68] sm:$0xff]
          %v451 = vld [vmem:[%s361 + $0x70] sm:$0xff]
          %v452 = vld [vmem:[%s361 + $0x78] sm:$0xff]
          %453 = vmatpush.msra.mxu0 %v452
          %454 = vmatpush.msra.mxu0 %v451
          %455 = vmatpush.msra.mxu0 %v450
          %456 = vmatpush.msra.mxu0 %v449
          %457 = vmatpush.msra.mxu0 %v448
          %458 = vmatpush.msra.mxu0 %v447
          %459 = vmatpush.msra.mxu0 %v446
          %460 = vmatpush.msra.mxu0 %v445
          %461 = vmatpush.msra.mxu0 %v444
          %462 = vmatpush.msra.mxu0 %v443
          %463 = vmatpush.msra.mxu0 %v442
          %464 = vmatpush.msra.mxu0 %v441
          %465 = vmatpush.msra.mxu0 %v440
          %466 = vmatpush.msra.mxu0 %v439
          %467 = vmatpush.msra.mxu0 %v438
          %468 = vmatpush.msra.mxu0 %v437
          %469 = vmatmul.f32.gmra.mxu0 %v429
          %v470 = vpop.f32.mrf.mxu0
          %v471 = vadd.f32 0.0, %v470
          %472 = vdwg.mxu0
          %v473 = vadd.f32 %v436, %v471
          %474 = vst [vmem:[#allocation2] sm:$0xff] %v473
        $region64: #{tpu_custom_call.1} parent=43 // pred_fallthru
          _
        %p475 = scmp.eq.s32.totalorder %s36, 1
        %p476 = pnand %p425, %p475
        %p477 = pneg %p476
        // Predicated region
        $region69: #{tpu_custom_call.1} parent=43 // pred_check
          _
        $region70: #{tpu_custom_call.1} parent=43 // pred_check_branch
          %479 = sbr.rel (%p476) target = $region72
        $region71: #{tpu_custom_call.1} parent=43 // pred_region
          %v480 = vld [vmem:[%s2] sm:$0xff]
          %v481 = vld [vmem:[#allocation2] sm:$0xff]
          %v482 = vld [vmem:[%s3] sm:$0xff]
          %484 = vset.pattern.permute.xlu0 0
          %485 = vperm.xlu0 %484, %v482
          %v486 = vpop.permute.xlu0 %485
          %vm488 = vcmask 64512
          %v490 = vsel %vm488, %v480, 0
          %492 = vmatpush.msra.mxu0 0.0
          %493 = vmatpush.msra.mxu0 0.0
          %494 = vmatpush.msra.mxu0 0.0
          %495 = vmatpush.msra.mxu0 0.0
          %496 = vmatpush.msra.mxu0 0.0
          %497 = vmatpush.msra.mxu0 0.0
          %498 = vmatpush.msra.mxu0 0.0
          %499 = vmatpush.msra.mxu0 0.0
          %500 = vmatpush.msra.mxu0 0.0
          %501 = vmatpush.msra.mxu0 0.0
          %502 = vmatpush.msra.mxu0 0.0
          %503 = vmatpush.msra.mxu0 0.0
          %504 = vmatpush.msra.mxu0 0.0
          %505 = vmatpush.msra.mxu0 0.0
          %506 = vmatpush.msra.mxu0 0.0
          %507 = vmatpush.msra.mxu0 %v481
          %508 = vmatmul.f32.gmra.mxu0 %v490
          %v509 = vpop.f32.mrf.mxu0
          %v510 = vadd.f32 %v486, %v509
          %511 = vdwg.mxu0
          %v512 = vmax.f32 %v510, 0.0
          %v513 = vld [vmem:[#allocation9] sm:$0xff]
          %v514 = vmul.f32 %v512, %v513
          %515 = vst [vmem:[#allocation3] sm:$0xff] %v514
        $region72: #{tpu_custom_call.1} parent=43 // pred_fallthru
          _
        %p516 = scmp.eq.s32.totalorder %s35, 1
        // Predicated region
        $region73: #{tpu_custom_call.1} parent=43 // pred_check
          %p517 = pneg %p516
        $region74: #{tpu_custom_call.1} parent=43 // pred_check_branch
          %519 = sbr.rel (%p517) target = $region76
        $region75: #{tpu_custom_call.1} parent=43 // pred_region
          %v520 = vld [vmem:[#allocation3] sm:$0xff]
          %v521 = vld [vmem:[%s376] sm:$0xff]
          %v522 = vld [vmem:[%s376 + $0x8] sm:$0xff]
          %v523 = vld [vmem:[%s376 + $0x10] sm:$0xff]
          %v524 = vld [vmem:[%s376 + $0x18] sm:$0xff]
          %v525 = vld [vmem:[%s376 + $0x20] sm:$0xff]
          %v526 = vld [vmem:[%s376 + $0x28] sm:$0xff]
          %v527 = vld [vmem:[%s376 + $0x30] sm:$0xff]
          %v528 = vld [vmem:[%s376 + $0x38] sm:$0xff]
          %v529 = vld [vmem:[%s376 + $0x40] sm:$0xff]
          %v530 = vld [vmem:[%s376 + $0x48] sm:$0xff]
          %v531 = vld [vmem:[%s376 + $0x50] sm:$0xff]
          %v532 = vld [vmem:[%s376 + $0x58] sm:$0xff]
          %v533 = vld [vmem:[%s376 + $0x60] sm:$0xff]
          %v534 = vld [vmem:[%s376 + $0x68] sm:$0xff]
          %v535 = vld [vmem:[%s376 + $0x70] sm:$0xff]
          %v536 = vld [vmem:[%s376 + $0x78] sm:$0xff]
          %537 = vmatpush.msra.mxu0 %v536
          %538 = vmatpush.msra.mxu0 %v535
          %539 = vmatpush.msra.mxu0 %v534
          %540 = vmatpush.msra.mxu0 %v533
          %541 = vmatpush.msra.mxu0 %v532
          %542 = vmatpush.msra.mxu0 %v531
          %543 = vmatpush.msra.mxu0 %v530
          %544 = vmatpush.msra.mxu0 %v529
          %545 = vmatpush.msra.mxu0 %v528
          %546 = vmatpush.msra.mxu0 %v527
          %547 = vmatpush.msra.mxu0 %v526
          %548 = vmatpush.msra.mxu0 %v525
          %549 = vmatpush.msra.mxu0 %v524
          %550 = vmatpush.msra.mxu0 %v523
          %551 = vmatpush.msra.mxu0 %v522
          %552 = vmatpush.msra.mxu0 %v521
          %553 = vmatmul.f32.gmra.mxu0 %v520
          %v554 = vpop.f32.mrf.mxu0
          %v555 = vadd.f32 0.0, %v554
          %556 = vdwg.mxu0
          %557 = vst [vmem:[%s415] sm:$0xff] %v555
        $region76: #{tpu_custom_call.1} parent=43 // pred_fallthru
          _
        %s558 = sand.u32 %s219, 1
        %s559 = scalar_lea.sflag [#allocation6], %s558
        %s560 = sand.u32 %s219, 1
        %s561 = smul.addr %s560, 8
        %s562 = scalar_lea.vmem [#allocation12], %s561
        // Predicated region
        $region77: #{tpu_custom_call.1} parent=43 // pred_check
          %p563 = pneg %p229
        $region78: #{tpu_custom_call.1} parent=43 // pred_check_branch
          %565 = sbr.rel (%p563) target = $region80
        $region79: #{tpu_custom_call.1} parent=43 // pred_region
          %s566 = ssub.s32 1, %s35
          %568 = vsyncadd %s559, 0
          %s569 = smul.addr %s566, 2
          %s570 = sadd.s32 %s36, %s569
          %s571 = smul.addr %s34, 4
          %s572 = sadd.s32 %s570, %s571
          %s573 = smul.addr %s572, 8
          %s574 = scalar_lea.hbm %s6, %s573
          %s576 = sshll.u32 %s562, 4
          %s577 = int_to_ptr.vmem [resolvable:$true] %s576
          %s578 = sshll.u32 %s574, 4
          %s579 = int_to_ptr.hbm [resolvable:$true] %s578
          %581 = dma.vmem_to_hbm [thread:$0]  %s577, 128, %s579, %s559
        $region80: #{tpu_custom_call.1} parent=43 // pred_fallthru
          _
      $region44: #{tpu_custom_call.1} parent=5 // pred_fallthru
        _
      %p582 = scmp.le.s32.totalorder 2, %s24
      // Predicated region
      $region81: #{tpu_custom_call.1} parent=5 // pred_check
        %p583 = pneg %p582
      $region82: #{tpu_custom_call.1} parent=5 // pred_check_branch
        %585 = sbr.rel (%p583) target = $region84
      $region83: #{tpu_custom_call.1} parent=5 // pred_region
        %s586 = ssub.s32 %s24, 2
        // Predicated region
        $region85: #{tpu_custom_call.1} parent=83 // pred_check
          %p587 = pneg %p235
        $region86: #{tpu_custom_call.1} parent=83 // pred_check_branch
          %589 = sbr.rel (%p587) target = $region88
        $region87: #{tpu_custom_call.1} parent=83 // pred_region
          %s590 = sand.u32 %s220, 1
          %s591 = scalar_lea.sflag [#allocation6], %s590
          %s592 = sand.u32 %s220, 1
          %s593 = smul.addr %s592, 8
          %s594 = scalar_lea.vmem [#allocation12], %s593
          %596 = dma.done %s591, 128
        $region88: #{tpu_custom_call.1} parent=83 // pred_fallthru
          _
      $region84: #{tpu_custom_call.1} parent=5 // pred_fallthru
        _
    $region6: #{tpu_custom_call.1} parent=1 // loop_footer
      %s28 = sadd.s32 1, %s24
    $region7: #{tpu_custom_call.1} parent=1 // loop_footer_branch
      %23 = sbr.rel target = $region3
    $region8: #{tpu_custom_call.1} parent=1 // loop_exit
      _
    %597 = vsyncpa [#allocation5], 1
    %s598 = scalar_lea.sflag [#allocation5], 1
    %599 = vsyncpa %s598, 1
    %600 = vsyncpa [#allocation8], 1
    %s601 = scalar_lea.sflag [#allocation8], 1
    %602 = vsyncpa %s601, 1
    %603 = vsyncpa [#allocation11], 1
    %s604 = scalar_lea.sflag [#allocation11], 1
    %605 = vsyncpa %s604, 1
    %606 = vsyncpa [#allocation6], 1
    %s607 = scalar_lea.sflag [#allocation6], 1
    %608 = vsyncpa %s607, 1

// kernel: tpu_custom_call.1
$region0: #{tpu_custom_call.1}
  #allocation0 [shape = 'u32[]', space=smem, size = 0x4, offset = 0x4, fixed_abs, tag = 'smem constant byte address 0x4 - core index']
  #allocation1 [shape = 'u32[72,128]{1,0:T(1,128)}', space=vmem, size = 0x9000, scoped, tag = 'internal scratch']
  #allocation2 [shape = 'f32[8,128]{1,0:T(8,128)}', space=vmem, size = 0x1000, scoped, tag = 'scratch operand']
  #allocation3 [shape = 'f32[8,128]{1,0:T(8,128)}', space=vmem, size = 0x1000, scoped, tag = 'scratch operand']
  %s0 = inlined_call_operand.hbm [shape: f32[2,8,256], index: 0, kind: input, shape index: {}]
  %s1 = inlined_call_operand.hbm [shape: f32[256,128], index: 1, kind: input, shape index: {}]
  %s2 = inlined_call_operand.vmem [shape: f32[8,8], index: 2, kind: input, shape index: {}]
  %s3 = inlined_call_operand.vmem [shape: f32[8,1], index: 3, kind: input, shape index: {}]
  %s4 = inlined_call_operand.hbm [shape: f32[8,128], index: 4, kind: input, shape index: {}]
  %s5 = inlined_call_operand.hbm [shape: f32[128,256], index: 5, kind: input, shape index: {}]
  %s6 = inlined_call_operand.hbm [shape: f32[2,16,256], index: 6, kind: output, shape index: {}]
  %s7 = sld [smem:[#allocation0]]
  $region89: #{tpu_custom_call.1} parent=0
    _
  %s9 = ssub.s32 1, %s7
  %s10 = scalar_select 0, %s9, %s7
  $region1: #{tpu_custom_call.1} parent=0
    #allocation4 [shape = 'u8[8192]{0}', space=vmem, size = 0x2000, scoped, tag = 'input window, operand 0']
    #allocation5 [shape = 's32[2]{0}', space=sflag, size = 0x8, scoped, tag = 'scoped memory for tpu_custom_call.1']
    #allocation6 [shape = 's32[2]{0}', space=sflag, size = 0x8, scoped, tag = 'scoped memory for tpu_custom_call.1']
    #allocation7 [shape = 'u8[131072]{0}', space=vmem, size = 0x20000, scoped, tag = 'input window, operand 1']
    #allocation8 [shape = 's32[2]{0}', space=sflag, size = 0x8, scoped, tag = 'scoped memory for tpu_custom_call.1']
    #allocation9 [shape = 'u8[4096]{0}', space=vmem, size = 0x1000, scoped, tag = 'input window, operand 4, single buffered']
    #allocation10 [shape = 'u8[131072]{0}', space=vmem, size = 0x20000, scoped, tag = 'input window, operand 5']
    #allocation11 [shape = 's32[2]{0}', space=sflag, size = 0x8, scoped, tag = 'scoped memory for tpu_custom_call.1']
    #allocation12 [shape = 'u8[8192]{0}', space=vmem, size = 0x2000, scoped, tag = 'output window, operand 0']
    %11 = vsyncpa [#allocation5], 0
    %s12 = scalar_lea.sflag [#allocation5], 1
    %13 = vsyncpa %s12, 0
    %14 = vsyncpa [#allocation8], 0
    %s15 = scalar_lea.sflag [#allocation8], 1
    %16 = vsyncpa %s15, 0
    %17 = vsyncpa [#allocation11], 0
    %s18 = scalar_lea.sflag [#allocation11], 1
    %19 = vsyncpa %s18, 0
    %20 = vsyncpa [#allocation6], 0
    %s21 = scalar_lea.sflag [#allocation6], 1
    %22 = vsyncpa %s21, 0
    loop: start=0, step=1, limit=10
    $region2: #{tpu_custom_call.1} parent=1 // loop_pre_header
      _
    $region3: #{tpu_custom_call.1} parent=1 // loop_header
      %s24 = sphi 0, %s28
      %p25 = scmp.ge.s32.totalorder %s24, 10
      %s31 = sphi 0, %s50
      %s32 = sphi 0, %s46
      %s33 = sphi 0, %s42
      %s34 = sphi 0, %s31
      %s35 = sphi 0, %s32
      %s36 = sphi 0, %s33
      %s37 = sphi 0, %s34
      %s38 = sphi 0, %s35
      %s39 = sphi 0, %s36
      %s61 = sphi 0, %s63
      %s64 = sphi 0, %s61
      %s65 = sphi 0, %s64
      %s81 = sphi 0, %s65
      %s93 = sphi 0, %s95
      %s96 = sphi 0, %s93
      %s97 = sphi 0, %s96
      %s113 = sphi 0, %s97
      %s117 = sphi 0, %s117
      %s119 = sphi 0, %s117
      %s120 = sphi 0, %s119
      %s134 = sphi 0, %s120
      %s138 = sphi 0, %s138
      %s140 = sphi 0, %s138
      %s141 = sphi 0, %s140
      %s155 = sphi 0, %s141
      %s159 = sphi 0, %s159
      %s161 = sphi 0, %s159
      %s162 = sphi 0, %s161
      %s176 = sphi 0, %s162
      %s184 = sphi 0, %s186
      %s187 = sphi 0, %s184
      %s188 = sphi 0, %s187
      %s204 = sphi 0, %s188
      %s216 = sphi 0, %s218
      %s219 = sphi 0, %s216
      %s220 = sphi 0, %s219
      %s236 = sphi 0, %s220
    $region4: #{tpu_custom_call.1} parent=1 // loop_header_branch
      %27 = sbr.rel (%p25) target = $region8
    $region5: #{tpu_custom_call.1} parent=1 // loop_body
      %s29 = ssub.s32 %s24, 1
      %s30 = ssub.s32 %s24, 2
      %s40 = sadd.s32 1, %s33
      %p41 = scmp.ge.s32.totalorder %s40, 2
      %s42 = scalar_select %p41, 0, %s40
      %s43 = sadd.s32 1, %s32
      %s44 = scalar_select %p41, %s43, %s32
      %p45 = scmp.ge.s32.totalorder %s44, 2
      %s46 = scalar_select %p45, 0, %s44
      %s47 = sadd.s32 1, %s31
      %s48 = scalar_select %p45, %s47, %s31
      %p49 = scmp.ge.s32.totalorder %s48, 2
      %s50 = scalar_select %p49, 0, %s48
      %s51 = ssub.s32 1, %s32
      %s52 = smul.u32 %s33, %s51
      %s53 = sadd.s32 %s52, %s32
      %s54 = ssub.s32 1, %s46
      %s55 = smul.u32 %s42, %s54
      %s56 = sadd.s32 %s55, %s46
      %s57 = ssub.s32 %s31, %s50
      %s58 = ssub.s32 %s53, %s56
      %s59 = sor.u32 %s57, %s58
      %p60 = scmp.eq.s32.totalorder %s59, 0
      %s62 = sadd.s32 %s61, 1
      %s63 = scalar_select %p60, %s61, %s62
      %p66 = pneg %p60
      %p67 = scmp.eq.s32.totalorder %s24, 7
      %p68 = por %p66, %p67
      %p69 = scmp.ne.s32.totalorder %s61, %s64
      %p70 = scmp.eq.s32.totalorder %s24, 0
      %p71 = por %p69, %p70
      %p72 = scmp.ne.s32.totalorder %s61, %s64
      %p73 = scmp.eq.s32.totalorder %s29, 7
      %p74 = por %p72, %p73
      %p75 = scmp.ne.s32.totalorder %s64, %s65
      %p76 = scmp.eq.s32.totalorder %s29, 0
      %p77 = por %p75, %p76
      %p78 = scmp.ne.s32.totalorder %s64, %s65
      %p79 = scmp.eq.s32.totalorder %s30, 7
      %p80 = por %p78, %p79
      %p82 = scmp.ne.s32.totalorder %s65, %s81
      %p83 = scmp.eq.s32.totalorder %s30, 0
      %p84 = por %p82, %p83
      %s85 = ssub.s32 1, %s32
      %s86 = smul.u32 %s33, %s85
      %s87 = sadd.s32 %s86, %s32
      %s88 = ssub.s32 1, %s46
      %s89 = smul.u32 %s42, %s88
      %s90 = sadd.s32 %s89, %s46
      %s91 = ssub.s32 %s87, %s90
      %p92 = scmp.eq.s32.totalorder %s91, 0
      %s94 = sadd.s32 %s93, 1
      %s95 = scalar_select %p92, %s93, %s94
      %p98 = pneg %p92
      %p99 = scmp.eq.s32.totalorder %s24, 7
      %p100 = por %p98, %p99
      %p101 = scmp.ne.s32.totalorder %s93, %s96
      %p102 = scmp.eq.s32.totalorder %s24, 0
      %p103 = por %p101, %p102
      %p104 = scmp.ne.s32.totalorder %s93, %s96
      %p105 = scmp.eq.s32.totalorder %s29, 7
      %p106 = por %p104, %p105
      %p107 = scmp.ne.s32.totalorder %s96, %s97
      %p108 = scmp.eq.s32.totalorder %s29, 0
      %p109 = por %p107, %p108
      %p110 = scmp.ne.s32.totalorder %s96, %s97
      %p111 = scmp.eq.s32.totalorder %s30, 7
      %p112 = por %p110, %p111
      %p114 = scmp.ne.s32.totalorder %s97, %s113
      %p115 = scmp.eq.s32.totalorder %s30, 0
      %p116 = por %p114, %p115
      %s118 = sadd.s32 %s117, 1
      %p121 = scmp.eq.s32.totalorder %s24, 7
      %p122 = scmp.ne.s32.totalorder %s117, %s119
      %p123 = scmp.eq.s32.totalorder %s24, 0
      %p124 = por %p122, %p123
      %p125 = scmp.ne.s32.totalorder %s117, %s119
      %p126 = scmp.eq.s32.totalorder %s29, 7
      %p127 = por %p125, %p126
      %p128 = scmp.ne.s32.totalorder %s119, %s120
      %p129 = scmp.eq.s32.totalorder %s29, 0
      %p130 = por %p128, %p129
      %p131 = scmp.ne.s32.totalorder %s119, %s120
      %p132 = scmp.eq.s32.totalorder %s30, 7
      %p133 = por %p131, %p132
      %p135 = scmp.ne.s32.totalorder %s120, %s134
      %p136 = scmp.eq.s32.totalorder %s30, 0
      %p137 = por %p135, %p136
      %s139 = sadd.s32 %s138, 1
      %p142 = scmp.eq.s32.totalorder %s24, 7
      %p143 = scmp.ne.s32.totalorder %s138, %s140
      %p144 = scmp.eq.s32.totalorder %s24, 0
      %p145 = por %p143, %p144
      %p146 = scmp.ne.s32.totalorder %s138, %s140
      %p147 = scmp.eq.s32.totalorder %s29, 7
      %p148 = por %p146, %p147
      %p149 = scmp.ne.s32.totalorder %s140, %s141
      %p150 = scmp.eq.s32.totalorder %s29, 0
      %p151 = por %p149, %p150
      %p152 = scmp.ne.s32.totalorder %s140, %s141
      %p153 = scmp.eq.s32.totalorder %s30, 7
      %p154 = por %p152, %p153
      %p156 = scmp.ne.s32.totalorder %s141, %s155
      %p157 = scmp.eq.s32.totalorder %s30, 0
      %p158 = por %p156, %p157
      %s160 = sadd.s32 %s159, 1
      %p163 = scmp.eq.s32.totalorder %s24, 7
      %p164 = scmp.ne.s32.totalorder %s159, %s161
      %p165 = scmp.eq.s32.totalorder %s24, 0
      %p166 = por %p164, %p165
      %p167 = scmp.ne.s32.totalorder %s159, %s161
      %p168 = scmp.eq.s32.totalorder %s29, 7
      %p169 = por %p167, %p168
      %p170 = scmp.ne.s32.totalorder %s161, %s162
      %p171 = scmp.eq.s32.totalorder %s29, 0
      %p172 = por %p170, %p171
      %p173 = scmp.ne.s32.totalorder %s161, %s162
      %p174 = scmp.eq.s32.totalorder %s30, 7
      %p175 = por %p173, %p174
      %p177 = scmp.ne.s32.totalorder %s162, %s176
      %p178 = scmp.eq.s32.totalorder %s30, 0
      %p179 = por %p177, %p178
      %s180 = smul.u32 %s33, %s32
      %s181 = smul.u32 %s42, %s46
      %s182 = ssub.s32 %s180, %s181
      %p183 = scmp.eq.s32.totalorder %s182, 0
      %s185 = sadd.s32 %s184, 1
      %s186 = scalar_select %p183, %s184, %s185
      %p189 = pneg %p183
      %p190 = scmp.eq.s32.totalorder %s24, 7
      %p191 = por %p189, %p190
      %p192 = scmp.ne.s32.totalorder %s184, %s187
      %p193 = scmp.eq.s32.totalorder %s24, 0
      %p194 = por %p192, %p193
      %p195 = scmp.ne.s32.totalorder %s184, %s187
      %p196 = scmp.eq.s32.totalorder %s29, 7
      %p197 = por %p195, %p196
      %p198 = scmp.ne.s32.totalorder %s187, %s188
      %p199 = scmp.eq.s32.totalorder %s29, 0
      %p200 = por %p198, %p199
      %p201 = scmp.ne.s32.totalorder %s187, %s188
      %p202 = scmp.eq.s32.totalorder %s30, 7
      %p203 = por %p201, %p202
      %p205 = scmp.ne.s32.totalorder %s188, %s204
      %p206 = scmp.eq.s32.totalorder %s30, 0
      %p207 = por %p205, %p206
      %s208 = ssub.s32 1, %s32
      %s209 = ssub.s32 1, %s46
      %s210 = ssub.s32 %s31, %s50
      %s211 = ssub.s32 %s208, %s209
      %s212 = sor.u32 %s210, %s211
      %s213 = ssub.s32 %s33, %s42
      %s214 = sor.u32 %s212, %s213
      %p215 = scmp.eq.s32.totalorder %s214, 0
      %s217 = sadd.s32 %s216, 1
      %s218 = scalar_select %p215, %s216, %s217
      %p221 = pneg %p215
      %p222 = scmp.eq.s32.totalorder %s24, 7
      %p223 = por %p221, %p222
      %p224 = scmp.ne.s32.totalorder %s216, %s219
      %p225 = scmp.eq.s32.totalorder %s24, 0
      %p226 = por %p224, %p225
      %p227 = scmp.ne.s32.totalorder %s216, %s219
      %p228 = scmp.eq.s32.totalorder %s29, 7
      %p229 = por %p227, %p228
      %p230 = scmp.ne.s32.totalorder %s219, %s220
      %p231 = scmp.eq.s32.totalorder %s29, 0
      %p232 = por %p230, %p231
      %p233 = scmp.ne.s32.totalorder %s219, %s220
      %p234 = scmp.eq.s32.totalorder %s30, 7
      %p235 = por %p233, %p234
      %p237 = scmp.ne.s32.totalorder %s220, %s236
      %p238 = scmp.eq.s32.totalorder %s30, 0
      %p239 = por %p237, %p238
      %p240 = scmp.le.s32.totalorder 1, %s24
      %p241 = scmp.lt.s32.totalorder %s24, 9
      %p242 = pnand %p240, %p241
      %p243 = pneg %p242
      // Predicated region
      $region9: #{tpu_custom_call.1} parent=5 // pred_check
        _
      $region10: #{tpu_custom_call.1} parent=5 // pred_check_branch
        %245 = sbr.rel (%p242) target = $region12
      $region11: #{tpu_custom_call.1} parent=5 // pred_region
        %s246 = ssub.s32 %s24, 1
        // Predicated region
        $region13: #{tpu_custom_call.1} parent=11 // pred_check
          %p247 = pneg %p130
        $region14: #{tpu_custom_call.1} parent=11 // pred_check_branch
          %249 = sbr.rel (%p247) target = $region16
        $region15: #{tpu_custom_call.1} parent=11 // pred_region
          _
        $region16: #{tpu_custom_call.1} parent=11 // pred_fallthru
          _
        // Predicated region
        $region17: #{tpu_custom_call.1} parent=11 // pred_check
          %p250 = pneg %p151
        $region18: #{tpu_custom_call.1} parent=11 // pred_check_branch
          %252 = sbr.rel (%p250) target = $region20
        $region19: #{tpu_custom_call.1} parent=11 // pred_region
          _
        $region20: #{tpu_custom_call.1} parent=11 // pred_fallthru
          _
        // Predicated region
        $region21: #{tpu_custom_call.1} parent=11 // pred_check
          %p253 = pneg %p172
        $region22: #{tpu_custom_call.1} parent=11 // pred_check_branch
          %255 = sbr.rel (%p253) target = $region24
        $region23: #{tpu_custom_call.1} parent=11 // pred_region
          %257 = vsyncadd [#allocation8], 0
          %s259 = sshll.u32 %s4, 4
          %s260 = int_to_ptr.hbm [resolvable:$true] %s259
          %s261 = sshll.u32 [#allocation9], 4
          %s262 = int_to_ptr.vmem [resolvable:$true] %s261
          %264 = dma.hbm_to_vmem [thread:$0]  %s260, 128, %s262, [#allocation8]
        $region24: #{tpu_custom_call.1} parent=11 // pred_fallthru
          _
      $region12: #{tpu_custom_call.1} parent=5 // pred_fallthru
        _
      %p265 = scmp.lt.s32.totalorder %s24, 8
      // Predicated region
      $region25: #{tpu_custom_call.1} parent=5 // pred_check
        %p266 = pneg %p265
      $region26: #{tpu_custom_call.1} parent=5 // pred_check_branch
        %268 = sbr.rel (%p266) target = $region28
      $region27: #{tpu_custom_call.1} parent=5 // pred_region
        // Predicated region
        $region29: #{tpu_custom_call.1} parent=27 // pred_check
          %p269 = pneg %p71
        $region30: #{tpu_custom_call.1} parent=27 // pred_check_branch
          %271 = sbr.rel (%p269) target = $region32
        $region31: #{tpu_custom_call.1} parent=27 // pred_region
          %s272 = sand.u32 %s61, 1
          %s273 = scalar_lea.sflag [#allocation5], %s272
          %s274 = sand.u32 %s61, 1
          %s275 = smul.addr %s274, 8
          %s276 = scalar_lea.vmem [#allocation4], %s275
          %s277 = ssub.s32 1, %s32
          %s278 = smul.u32 %s33, %s277
          %s279 = sadd.s32 %s278, %s32
          %281 = vsyncadd %s273, 0
          %s282 = smul.addr %s31, 2
          %s283 = sadd.s32 %s279, %s282
          %s284 = smul.addr %s283, 8
          %s285 = scalar_lea.hbm %s0, %s284
          %s287 = sshll.u32 %s285, 4
          %s288 = int_to_ptr.hbm [resolvable:$true] %s287
          %s289 = sshll.u32 %s276, 4
          %s290 = int_to_ptr.vmem [resolvable:$true] %s289
          %292 = dma.hbm_to_vmem [thread:$0]  %s288, 128, %s290, %s273
        $region32: #{tpu_custom_call.1} parent=27 // pred_fallthru
          _
        // Predicated region
        $region33: #{tpu_custom_call.1} parent=27 // pred_check
          %p293 = pneg %p103
        $region34: #{tpu_custom_call.1} parent=27 // pred_check_branch
          %295 = sbr.rel (%p293) target = $region36
        $region35: #{tpu_custom_call.1} parent=27 // pred_region
          %s296 = sand.u32 %s24, 1
          %s297 = scalar_lea.sflag [#allocation8], %s296
          %s298 = sand.u32 %s93, 1
          %s299 = smul.addr %s298, 128
          %s300 = scalar_lea.vmem [#allocation7], %s299
          %s301 = ssub.s32 1, %s32
          %s302 = smul.u32 %s33, %s301
          %s303 = sadd.s32 %s302, %s32
          %s304 = smul.u32 16, %s303
          %306 = vsyncadd %s297, 0
          %s307 = smul.addr %s304, 8
          %s308 = scalar_lea.hbm %s1, %s307
          %s309 = sshll.u32 %s308, 4
          %s310 = int_to_ptr.hbm [resolvable:$true] %s309
          %s311 = sshll.u32 %s300, 4
          %s312 = int_to_ptr.vmem [resolvable:$true] %s311
          %317 = dma.hbm_to_vmem [thread:$0]  %s310, 2048, %s312, %s297, 128, 128, 8
        $region36: #{tpu_custom_call.1} parent=27 // pred_fallthru
          _
        // Predicated region
        $region37: #{tpu_custom_call.1} parent=27 // pred_check
          %p318 = pneg %p194
        $region38: #{tpu_custom_call.1} parent=27 // pred_check_branch
          %320 = sbr.rel (%p318) target = $region40
        $region39: #{tpu_custom_call.1} parent=27 // pred_region
          %s321 = sand.u32 %s184, 1
          %s322 = scalar_lea.sflag [#allocation11], %s321
          %s323 = sand.u32 %s184, 1
          %s324 = smul.addr %s323, 128
          %s325 = scalar_lea.vmem [#allocation10], %s324
          %s326 = smul.u32 %s33, %s32
          %328 = vsyncadd %s322, 0
          %s329 = smul.addr %s326, 8
          %s330 = scalar_lea.hbm %s5, %s329
          %s331 = sshll.u32 %s330, 4
          %s332 = int_to_ptr.hbm [resolvable:$true] %s331
          %s333 = sshll.u32 %s325, 4
          %s334 = int_to_ptr.vmem [resolvable:$true] %s333
          %339 = dma.hbm_to_vmem [thread:$0]  %s332, 2048, %s334, %s322, 256, 128, 8
        $region40: #{tpu_custom_call.1} parent=27 // pred_fallthru
          _
      $region28: #{tpu_custom_call.1} parent=5 // pred_fallthru
        _
      %p340 = scmp.le.s32.totalorder 1, %s24
      %p341 = scmp.lt.s32.totalorder %s24, 9
      %p342 = pnand %p340, %p341
      %p343 = pneg %p342
      // Predicated region
      $region41: #{tpu_custom_call.1} parent=5 // pred_check
        _
      $region42: #{tpu_custom_call.1} parent=5 // pred_check_branch
        %345 = sbr.rel (%p342) target = $region44
      $region43: #{tpu_custom_call.1} parent=5 // pred_region
        %s346 = ssub.s32 %s24, 1
        %s347 = sand.u32 %s64, 1
        %s348 = scalar_lea.sflag [#allocation5], %s347
        %s349 = sand.u32 %s64, 1
        %s350 = smul.addr %s349, 8
        %s351 = scalar_lea.vmem [#allocation4], %s350
        // Predicated region
        $region45: #{tpu_custom_call.1} parent=43 // pred_check
          %p352 = pneg %p77
        $region46: #{tpu_custom_call.1} parent=43 // pred_check_branch
          %354 = sbr.rel (%p352) target = $region48
        $region47: #{tpu_custom_call.1} parent=43 // pred_region
          %356 = dma.done %s348, 128
        $region48: #{tpu_custom_call.1} parent=43 // pred_fallthru
          _
        %s357 = sand.u32 %s29, 1
        %s358 = scalar_lea.sflag [#allocation8], %s357
        %s359 = sand.u32 %s96, 1
        %s360 = smul.addr %s359, 128
        %s361 = scalar_lea.vmem [#allocation7], %s360
        // Predicated region
        $region49: #{tpu_custom_call.1} parent=43 // pred_check
          %p362 = pneg %p109
        $region50: #{tpu_custom_call.1} parent=43 // pred_check_branch
          %364 = sbr.rel (%p362) target = $region52
        $region51: #{tpu_custom_call.1} parent=43 // pred_region
          %366 = dma.done %s358, 2048
        $region52: #{tpu_custom_call.1} parent=43 // pred_fallthru
          _
        // Predicated region
        $region53: #{tpu_custom_call.1} parent=43 // pred_check
          %p367 = pneg %p172
        $region54: #{tpu_custom_call.1} parent=43 // pred_check_branch
          %369 = sbr.rel (%p367) target = $region56
        $region55: #{tpu_custom_call.1} parent=43 // pred_region
          %371 = dma.done [#allocation8], 128
        $region56: #{tpu_custom_call.1} parent=43 // pred_fallthru
          _
        %s372 = sand.u32 %s187, 1
        %s373 = scalar_lea.sflag [#allocation11], %s372
        %s374 = sand.u32 %s187, 1
        %s375 = smul.addr %s374, 128
        %s376 = scalar_lea.vmem [#allocation10], %s375
        // Predicated region
        $region57: #{tpu_custom_call.1} parent=43 // pred_check
          %p377 = pneg %p200
        $region58: #{tpu_custom_call.1} parent=43 // pred_check_branch
          %379 = sbr.rel (%p377) target = $region60
        $region59: #{tpu_custom_call.1} parent=43 // pred_region
          %381 = dma.done %s373, 2048
        $region60: #{tpu_custom_call.1} parent=43 // pred_fallthru
          _
        %s382 = sand.u32 %s64, 1
        %s383 = scalar_lea.sflag [#allocation5], %s382
        %s384 = sand.u32 %s64, 1
        %s385 = smul.addr %s384, 8
        %s386 = scalar_lea.vmem [#allocation4], %s385
        %p387 = pneg %p77
        %p388 = pneg %p74
        %s389 = sand.u32 %s29, 1
        %s390 = scalar_lea.sflag [#allocation8], %s389
        %s391 = sand.u32 %s96, 1
        %s392 = smul.addr %s391, 128
        %s393 = scalar_lea.vmem [#allocation7], %s392
        %p394 = pneg %p109
        %p395 = pneg %p106
        %p396 = pneg %p130
        %p397 = pneg %p127
        %p398 = pneg %p151
        %p399 = pneg %p148
        %p400 = pneg %p172
        %p401 = pneg %p169
        %s402 = sand.u32 %s187, 1
        %s403 = scalar_lea.sflag [#allocation11], %s402
        %s404 = sand.u32 %s187, 1
        %s405 = smul.addr %s404, 128
        %s406 = scalar_lea.vmem [#allocation10], %s405
        %p407 = pneg %p200
        %p408 = pneg %p197
        %p409 = pneg %p232
        %p410 = pneg %p229
        %s411 = sand.u32 %s219, 1
        %s412 = scalar_lea.sflag [#allocation6], %s411
        %s413 = sand.u32 %s219, 1
        %s414 = smul.addr %s413, 8
        %s415 = scalar_lea.vmem [#allocation12], %s414
        %s416 = ssub.s32 1, %s35
        %s417 = smul.u32 %s36, %s416
        %s418 = sadd.s32 %s417, %s35
        %s419 = ssub.s32 1, %s35
        %s420 = smul.u32 %s36, %s419
        %s421 = sadd.s32 %s420, %s35
        %s422 = smul.u32 16, %s421
        %s423 = smul.u32 %s36, %s35
        %s424 = ssub.s32 1, %s35
        %p425 = scmp.eq.s32.totalorder %s35, 0
        // Predicated region
        $region61: #{tpu_custom_call.1} parent=43 // pred_check
          %p426 = pneg %p425
        $region62: #{tpu_custom_call.1} parent=43 // pred_check_branch
          %428 = sbr.rel (%p426) target = $region64
        $region63: #{tpu_custom_call.1} parent=43 // pred_region
          %v429 = vld [vmem:[%s351] sm:$0xff]
          %430 = vst [vmem:[%s415] sm:$0xff] %v429
          %p431 = scmp.eq.s32.totalorder %s36, 0
          // Predicated region
          $region65: #{tpu_custom_call.1} parent=63 // pred_check
            %p432 = pneg %p431
          $region66: #{tpu_custom_call.1} parent=63 // pred_check_branch
            %434 = sbr.rel (%p432) target = $region68
          $region67: #{tpu_custom_call.1} parent=63 // pred_region
            %435 = vst [vmem:[#allocation2] sm:$0xff] 0.0
          $region68: #{tpu_custom_call.1} parent=63 // pred_fallthru
            _
          %v436 = vld [vmem:[#allocation2] sm:$0xff]
          %v437 = vld [vmem:[%s361] sm:$0xff]
          %v438 = vld [vmem:[%s361 + $0x8] sm:$0xff]
          %v439 = vld [vmem:[%s361 + $0x10] sm:$0xff]
          %v440 = vld [vmem:[%s361 + $0x18] sm:$0xff]
          %v441 = vld [vmem:[%s361 + $0x20] sm:$0xff]
          %v442 = vld [vmem:[%s361 + $0x28] sm:$0xff]
          %v443 = vld [vmem:[%s361 + $0x30] sm:$0xff]
          %v444 = vld [vmem:[%s361 + $0x38] sm:$0xff]
          %v445 = vld [vmem:[%s361 + $0x40] sm:$0xff]
          %v446 = vld [vmem:[%s361 + $0x48] sm:$0xff]
          %v447 = vld [vmem:[%s361 + $0x50] sm:$0xff]
          %v448 = vld [vmem:[%s361 + $0x58] sm:$0xff]
          %v449 = vld [vmem:[%s361 + $0x60] sm:$0xff]
          %v450 = vld [vmem:[%s361 + $0x68] sm:$0xff]
          %v451 = vld [vmem:[%s361 + $0x70] sm:$0xff]
          %v452 = vld [vmem:[%s361 + $0x78] sm:$0xff]
          %453 = vmatpush.msra.mxu0 %v452
          %454 = vmatpush.msra.mxu0 %v451
          %455 = vmatpush.msra.mxu0 %v450
          %456 = vmatpush.msra.mxu0 %v449
          %457 = vmatpush.msra.mxu0 %v448
          %458 = vmatpush.msra.mxu0 %v447
          %459 = vmatpush.msra.mxu0 %v446
          %460 = vmatpush.msra.mxu0 %v445
          %461 = vmatpush.msra.mxu0 %v444
          %462 = vmatpush.msra.mxu0 %v443
          %463 = vmatpush.msra.mxu0 %v442
          %464 = vmatpush.msra.mxu0 %v441
          %465 = vmatpush.msra.mxu0 %v440
          %466 = vmatpush.msra.mxu0 %v439
          %467 = vmatpush.msra.mxu0 %v438
          %468 = vmatpush.msra.mxu0 %v437
          %469 = vmatmul.f32.gmra.mxu0 %v429
          %v470 = vpop.f32.mrf.mxu0
          %v471 = vadd.f32 0.0, %v470
          %472 = vdwg.mxu0
          %v473 = vadd.f32 %v436, %v471
          %474 = vst [vmem:[#allocation2] sm:$0xff] %v473
        $region64: #{tpu_custom_call.1} parent=43 // pred_fallthru
          _
        %p475 = scmp.eq.s32.totalorder %s36, 1
        %p476 = pnand %p425, %p475
        %p477 = pneg %p476
        // Predicated region
        $region69: #{tpu_custom_call.1} parent=43 // pred_check
          _
        $region70: #{tpu_custom_call.1} parent=43 // pred_check_branch
          %479 = sbr.rel (%p476) target = $region72
        $region71: #{tpu_custom_call.1} parent=43 // pred_region
          %v480 = vld [vmem:[%s2] sm:$0xff]
          %v481 = vld [vmem:[#allocation2] sm:$0xff]
          %v482 = vld [vmem:[%s3] sm:$0xff]
          %484 = vset.pattern.permute.xlu0 0
          %485 = vperm.xlu0 %484, %v482
          %v486 = vpop.permute.xlu0 %485
          %vm488 = vcmask 64512
          %v490 = vsel %vm488, %v480, 0
          %492 = vmatpush.msra.mxu0 0.0
          %493 = vmatpush.msra.mxu0 0.0
          %494 = vmatpush.msra.mxu0 0.0
          %495 = vmatpush.msra.mxu0 0.0
          %496 = vmatpush.msra.mxu0 0.0
          %497 = vmatpush.msra.mxu0 0.0
          %498 = vmatpush.msra.mxu0 0.0
          %499 = vmatpush.msra.mxu0 0.0
          %500 = vmatpush.msra.mxu0 0.0
          %501 = vmatpush.msra.mxu0 0.0
          %502 = vmatpush.msra.mxu0 0.0
          %503 = vmatpush.msra.mxu0 0.0
          %504 = vmatpush.msra.mxu0 0.0
          %505 = vmatpush.msra.mxu0 0.0
          %506 = vmatpush.msra.mxu0 0.0
          %507 = vmatpush.msra.mxu0 %v481
          %508 = vmatmul.f32.gmra.mxu0 %v490
          %v509 = vpop.f32.mrf.mxu0
          %v510 = vadd.f32 %v486, %v509
          %511 = vdwg.mxu0
          %v512 = vmax.f32 %v510, 0.0
          %v513 = vld [vmem:[#allocation9] sm:$0xff]
          %v514 = vmul.f32 %v512, %v513
          %515 = vst [vmem:[#allocation3] sm:$0xff] %v514
        $region72: #{tpu_custom_call.1} parent=43 // pred_fallthru
          _
        %p516 = scmp.eq.s32.totalorder %s35, 1
        // Predicated region
        $region73: #{tpu_custom_call.1} parent=43 // pred_check
          %p517 = pneg %p516
        $region74: #{tpu_custom_call.1} parent=43 // pred_check_branch
          %519 = sbr.rel (%p517) target = $region76
        $region75: #{tpu_custom_call.1} parent=43 // pred_region
          %v520 = vld [vmem:[#allocation3] sm:$0xff]
          %v521 = vld [vmem:[%s376] sm:$0xff]
          %v522 = vld [vmem:[%s376 + $0x8] sm:$0xff]
          %v523 = vld [vmem:[%s376 + $0x10] sm:$0xff]
          %v524 = vld [vmem:[%s376 + $0x18] sm:$0xff]
          %v525 = vld [vmem:[%s376 + $0x20] sm:$0xff]
          %v526 = vld [vmem:[%s376 + $0x28] sm:$0xff]
          %v527 = vld [vmem:[%s376 + $0x30] sm:$0xff]
          %v528 = vld [vmem:[%s376 + $0x38] sm:$0xff]
          %v529 = vld [vmem:[%s376 + $0x40] sm:$0xff]
          %v530 = vld [vmem:[%s376 + $0x48] sm:$0xff]
          %v531 = vld [vmem:[%s376 + $0x50] sm:$0xff]
          %v532 = vld [vmem:[%s376 + $0x58] sm:$0xff]
          %v533 = vld [vmem:[%s376 + $0x60] sm:$0xff]
          %v534 = vld [vmem:[%s376 + $0x68] sm:$0xff]
          %v535 = vld [vmem:[%s376 + $0x70] sm:$0xff]
          %v536 = vld [vmem:[%s376 + $0x78] sm:$0xff]
          %537 = vmatpush.msra.mxu0 %v536
          %538 = vmatpush.msra.mxu0 %v535
          %539 = vmatpush.msra.mxu0 %v534
          %540 = vmatpush.msra.mxu0 %v533
          %541 = vmatpush.msra.mxu0 %v532
          %542 = vmatpush.msra.mxu0 %v531
          %543 = vmatpush.msra.mxu0 %v530
          %544 = vmatpush.msra.mxu0 %v529
          %545 = vmatpush.msra.mxu0 %v528
          %546 = vmatpush.msra.mxu0 %v527
          %547 = vmatpush.msra.mxu0 %v526
          %548 = vmatpush.msra.mxu0 %v525
          %549 = vmatpush.msra.mxu0 %v524
          %550 = vmatpush.msra.mxu0 %v523
          %551 = vmatpush.msra.mxu0 %v522
          %552 = vmatpush.msra.mxu0 %v521
          %553 = vmatmul.f32.gmra.mxu0 %v520
          %v554 = vpop.f32.mrf.mxu0
          %v555 = vadd.f32 0.0, %v554
          %556 = vdwg.mxu0
          %557 = vst [vmem:[%s415] sm:$0xff] %v555
        $region76: #{tpu_custom_call.1} parent=43 // pred_fallthru
          _
        %s558 = sand.u32 %s219, 1
        %s559 = scalar_lea.sflag [#allocation6], %s558
        %s560 = sand.u32 %s219, 1
        %s561 = smul.addr %s560, 8
        %s562 = scalar_lea.vmem [#allocation12], %s561
        // Predicated region
        $region77: #{tpu_custom_call.1} parent=43 // pred_check
          %p563 = pneg %p229
        $region78: #{tpu_custom_call.1} parent=43 // pred_check_branch
          %565 = sbr.rel (%p563) target = $region80
        $region79: #{tpu_custom_call.1} parent=43 // pred_region
          %s566 = ssub.s32 1, %s35
          %568 = vsyncadd %s559, 0
          %s569 = smul.addr %s566, 2
          %s570 = sadd.s32 %s36, %s569
          %s571 = smul.addr %s34, 4
          %s572 = sadd.s32 %s570, %s571
          %s573 = smul.addr %s572, 8
          %s574 = scalar_lea.hbm %s6, %s573
          %s576 = sshll.u32 %s562, 4
          %s577 = int_to_ptr.vmem [resolvable:$true] %s576
          %s578 = sshll.u32 %s574, 4
          %s579 = int_to_ptr.hbm [resolvable:$true] %s578
          %581 = dma.vmem_to_hbm [thread:$0]  %s577, 128, %s579, %s559
        $region80: #{tpu_custom_call.1} parent=43 // pred_fallthru
          _
      $region44: #{tpu_custom_call.1} parent=5 // pred_fallthru
        _
      %p582 = scmp.le.s32.totalorder 2, %s24
      // Predicated region
      $region81: #{tpu_custom_call.1} parent=5 // pred_check
        %p583 = pneg %p582
      $region82: #{tpu_custom_call.1} parent=5 // pred_check_branch
        %585 = sbr.rel (%p583) target = $region84
      $region83: #{tpu_custom_call.1} parent=5 // pred_region
        %s586 = ssub.s32 %s24, 2
        // Predicated region
        $region85: #{tpu_custom_call.1} parent=83 // pred_check
          %p587 = pneg %p235
        $region86: #{tpu_custom_call.1} parent=83 // pred_check_branch
          %589 = sbr.rel (%p587) target = $region88
        $region87: #{tpu_custom_call.1} parent=83 // pred_region
          %s590 = sand.u32 %s220, 1
          %s591 = scalar_lea.sflag [#allocation6], %s590
          %s592 = sand.u32 %s220, 1
          %s593 = smul.addr %s592, 8
          %s594 = scalar_lea.vmem [#allocation12], %s593
          %596 = dma.done %s591, 128
        $region88: #{tpu_custom_call.1} parent=83 // pred_fallthru
          _
      $region84: #{tpu_custom_call.1} parent=5 // pred_fallthru
        _
    $region6: #{tpu_custom_call.1} parent=1 // loop_footer
      %s28 = sadd.s32 1, %s24
    $region7: #{tpu_custom_call.1} parent=1 // loop_footer_branch
      %23 = sbr.rel target = $region3
    $region8: #{tpu_custom_call.1} parent=1 // loop_exit
      _
    %597 = vsyncpa [#allocation5], 1
    %s598 = scalar_lea.sflag [#allocation5], 1
    %599 = vsyncpa %s598, 1
    %600 = vsyncpa [#allocation8], 1
    %s601 = scalar_lea.sflag [#allocation8], 1
    %602 = vsyncpa %s601, 1
    %603 = vsyncpa [#allocation11], 1
    %s604 = scalar_lea.sflag [#allocation11], 1
    %605 = vsyncpa %s604, 1
    %606 = vsyncpa [#allocation6], 1
    %s607 = scalar_lea.sflag [#allocation6], 1
    %608 = vsyncpa %s607, 1

</llo_original>
